<compile_context>
chip_gen: v6e
topology: v6e:2x2x1
jax: 0.10.0
libtpu: 0.0.40
codegen_flags: <defaults>
</compile_context>

<pallas_src>
import jax
import jax.numpy as jnp
from jax.experimental import pallas as pl
from jax.experimental.pallas import tpu as pltpu


# --------------------------------------------------------------------------------------
# helpers
# --------------------------------------------------------------------------------------
def _round_up(n, m):
    return ((n + m - 1) // m) * m


def _pad_axis(x, target, axis):
    pad = target - x.shape[axis]
    if pad == 0:
        return x
    widths = [(0, 0)] * x.ndim
    widths[axis] = (0, pad)
    return jnp.pad(x, widths)


def _pick_tile(n, candidates):
    for c in candidates:
        if n % c == 0:
            return c
    return n


# --------------------------------------------------------------------------------------
# kernel 1: serial LSTM recurrence (emits hidden states only)
# --------------------------------------------------------------------------------------
def lstm_recurrence_kernel(x_ref, w_ref, b_ref, h_out_ref, h_sc, c_sc):
    """One grid step == Tt time steps of the LSTM.

    x_ref    : (B, Tt, Ep)         batch-first embeddings for this time block
    w_ref    : (Ep+Hp, 4*Hp)       fused [W_ih; W_hh] (pre-transposed, gate-padded)
    b_ref    : (1, 4*Hp)           fused b_ih + b_hh (gate-padded)
    h_out_ref: (B, Tt, Hp)         hidden states for this time block
    h_sc,c_sc: (B, Hp) f32 VMEM    LSTM state, persists across grid steps
    """
    tb = pl.program_id(0)

    @pl.when(tb == 0)
    def _init():
        h_sc[...] = jnp.zeros_like(h_sc)
        c_sc[...] = jnp.zeros_like(c_sc)

    B = x_ref.shape[0]
    Tt = x_ref.shape[1]
    Hp = h_sc.shape[1]

    # loop-invariant: read weights once, broadcast bias once (JAX does not CSE these)
    w = w_ref[...]                                              # (Ep+Hp, 4Hp)
    b = jnp.broadcast_to(b_ref[...], (B, b_ref.shape[1]))       # (B, 4Hp)

    h = h_sc[...]
    c = c_sc[...]
    for i in range(Tt):  # static full unroll (Tt small) -> LLO sees the whole block
        x_t = x_ref[:, i, :]                                    # (B, Ep)
        xh = jnp.concatenate([x_t, h], axis=1)                  # (B, Ep+Hp), lane-aligned
        gates = jnp.dot(xh, w, preferred_element_type=jnp.float32) + b   # (B, 4Hp)
        # gate order [i, f, g, o]; Hp is a multiple of 128 so slices are lane-aligned
        i_g = jax.nn.sigmoid(gates[:, 0 * Hp:1 * Hp])
        f_g = jax.nn.sigmoid(gates[:, 1 * Hp:2 * Hp])
        g_g = jnp.tanh(gates[:, 2 * Hp:3 * Hp])
        o_g = jax.nn.sigmoid(gates[:, 3 * Hp:4 * Hp])
        c = f_g * c + i_g * g_g
        h = o_g * jnp.tanh(c)
        h_out_ref[:, i, :] = h.astype(h_out_ref.dtype)
    h_sc[...] = h
    c_sc[...] = c


# --------------------------------------------------------------------------------------
# kernel 2: parallel FC / vocab projection over all (B*T) rows
# --------------------------------------------------------------------------------------
def fc_kernel(h_ref, w_ref, b_ref, o_ref):
    o_ref[...] = (
        jnp.dot(h_ref[...], w_ref[...], preferred_element_type=jnp.float32)
        + b_ref[...]
    ).astype(o_ref.dtype)


# --------------------------------------------------------------------------------------
# wrapper == DecoderRNN.forward (eval mode)
# --------------------------------------------------------------------------------------
def decoder_rnn_forward(features, captions, params, *, t_block=8):
    """features: (B, E) f32, captions: (B, Lc) int32. Returns (B, T, V), T = Lc."""
    embed_tbl = params["embed"]          # (V, E)
    w_ih = params["w_ih"]                # (E, 4H)   (PyTorch W_ih transposed)
    w_hh = params["w_hh"]                # (H, 4H)   (PyTorch W_hh transposed)
    b = params["b"]                      # (1, 4H)   b_ih + b_hh
    w_fc = params["w_fc"]                # (H, V)    (PyTorch fc.weight transposed)
    b_fc = params["b_fc"]                # (1, V)

    B, E = features.shape
    H = w_hh.shape[0]
    V = w_fc.shape[1]

    # ---- glue (plain JAX): embedding gather + concat(features); stays batch-first ----
    emb = jnp.take(embed_tbl, captions[:, :-1], axis=0)                  # (B, Lc-1, E)
    seq = jnp.concatenate([features[:, None, :], emb], axis=1)           # (B, T, E)
    T = seq.shape[1]

    # ---- hardware-aligned (zero) padding: exact, sliced off at the end ----
    Bp = _round_up(B, 8)
    Ep = _round_up(E, 128)
    Hp = _round_up(H, 128)
    Vp = _round_up(V, 128)
    Tt = t_block
    Tp = _round_up(T, Tt)

    seq_p = _pad_axis(_pad_axis(_pad_axis(seq.astype(jnp.float32), Bp, 0), Tp, 1), Ep, 2)

    # fused + gate-padded recurrence weight: rows [W_ih (Ep) ; W_hh (Hp)], cols 4*Hp
    w_ih_g = _pad_axis(w_ih.reshape(E, 4, H), Hp, 2).reshape(E, 4 * Hp)
    w_hh_g = _pad_axis(w_hh.reshape(H, 4, H), Hp, 2).reshape(H, 4 * Hp)
    w_cat = jnp.concatenate(
        [_pad_axis(w_ih_g, Ep, 0), _pad_axis(w_hh_g, Hp, 0)], axis=0)    # (Ep+Hp, 4Hp)
    b_g = _pad_axis(b.reshape(1, 4, H), Hp, 2).reshape(1, 4 * Hp)        # (1, 4Hp)

    w_fc_p = _pad_axis(_pad_axis(w_fc, Hp, 0), Vp, 1)                    # (Hp, Vp)
    b_fc_p = _pad_axis(b_fc, Vp, 1)                                      # (1, Vp)

    # ---- kernel 1: serial recurrence over time blocks ----
    hs = pl.pallas_call(
        lstm_recurrence_kernel,
        out_shape=jax.ShapeDtypeStruct((Bp, Tp, Hp), jnp.float32),
        grid_spec=pltpu.PrefetchScalarGridSpec(
            num_scalar_prefetch=0,
            grid=(Tp // Tt,),
            in_specs=[
                pl.BlockSpec((Bp, Tt, Ep), lambda tb: (0, tb, 0)),
                pl.BlockSpec((Ep + Hp, 4 * Hp), lambda tb: (0, 0)),
                pl.BlockSpec((1, 4 * Hp), lambda tb: (0, 0)),
            ],
            out_specs=pl.BlockSpec((Bp, Tt, Hp), lambda tb: (0, tb, 0)),
            scratch_shapes=[
                pltpu.VMEM((Bp, Hp), jnp.float32),   # h state
                pltpu.VMEM((Bp, Hp), jnp.float32),   # c state
            ],
        ),
        compiler_params=pltpu.CompilerParams(
            dimension_semantics=("arbitrary",)),      # recurrence is sequential
    )(seq_p, w_cat, b_g)

    # ---- kernel 2: big parallel matmul for the vocab projection ----
    M = Bp * Tp
    h2d = hs.reshape(M, Hp)                                              # free reshape
    tm = _pick_tile(M, (512, 256, 128, 64, 32, 16, 8))
    tn = _pick_tile(Vp, (512, 256, 128))

    logits = pl.pallas_call(
        fc_kernel,
        out_shape=jax.ShapeDtypeStruct((M, Vp), jnp.float32),
        grid_spec=pltpu.PrefetchScalarGridSpec(
            num_scalar_prefetch=0,
            grid=(M // tm, Vp // tn),
            in_specs=[
                pl.BlockSpec((tm, Hp), lambda i, j: (i, 0)),
                pl.BlockSpec((Hp, tn), lambda i, j: (0, j)),
                pl.BlockSpec((1, tn), lambda i, j: (0, j)),
            ],
            out_specs=pl.BlockSpec((tm, tn), lambda i, j: (i, j)),
        ),
        compiler_params=pltpu.CompilerParams(
            dimension_semantics=("parallel", "parallel")),  # megacore-shardable
    )(h2d, w_fc_p, b_fc_p)

    # dropout == identity (eval mode); strip padding, stay batch-first
    return logits.reshape(Bp, Tp, Vp)[:B, :T, :V]


# --------------------------------------------------------------------------------------
# pure-JAX reference (unpadded, unfused) for correctness check
# --------------------------------------------------------------------------------------
def _reference_forward(features, captions, params):
    embed_tbl = params["embed"]
    w_ih, w_hh, b = params["w_ih"], params["w_hh"], params["b"]
    w_fc, b_fc = params["w_fc"], params["b_fc"]
    H = w_hh.shape[0]

    emb = jnp.take(embed_tbl, captions[:, :-1], axis=0)
    seq = jnp.concatenate([features[:, None, :], emb], axis=1)           # (B, T, E)
    B = seq.shape[0]

    def step(carry, x_t):
        h, c = carry
        gates = x_t @ w_ih + h @ w_hh + b[0]
        i = jax.nn.sigmoid(gates[:, 0 * H:1 * H])
        f = jax.nn.sigmoid(gates[:, 1 * H:2 * H])
        g = jnp.tanh(gates[:, 2 * H:3 * H])
        o = jax.nn.sigmoid(gates[:, 3 * H:4 * H])
        c = f * c + i * g
        h = o * jnp.tanh(c)
        return (h, c), h @ w_fc + b_fc[0]

    init = (jnp.zeros((B, H), jnp.float32), jnp.zeros((B, H), jnp.float32))
    _, ys = jax.lax.scan(step, init, jnp.transpose(seq, (1, 0, 2)))
    return jnp.transpose(ys, (1, 0, 2))


if __name__ == "__main__":
    # Small, module-consistent shapes.
    embed_size, hidden_size, vocab_size = 32, 32, 128
    B, caption_len = 2, 8          # forward sees T = 1 + (caption_len - 1) = 8

    key = jax.random.PRNGKey(0)
    ks = jax.random.split(key, 8)
    scale = 0.1
    params = {
        "embed": scale * jax.random.normal(ks[0], (vocab_size, embed_size), jnp.float32),
        # PyTorch stores W_ih as (4H, E); we keep the transposed (E, 4H) layout.
        "w_ih": scale * jax.random.normal(ks[1], (embed_size, 4 * hidden_size), jnp.float32),
        "w_hh": scale * jax.random.normal(ks[2], (hidden_size, 4 * hidden_size), jnp.float32),
        # b = b_ih + b_hh, kept as a single (1, 4H) row.
        "b": scale * jax.random.normal(ks[3], (1, 4 * hidden_size), jnp.float32),
        "w_fc": scale * jax.random.normal(ks[4], (hidden_size, vocab_size), jnp.float32),
        "b_fc": scale * jax.random.normal(ks[5], (1, vocab_size), jnp.float32),
    }

    features = jax.random.normal(ks[6], (B, embed_size), jnp.float32)
    captions = jax.random.randint(ks[7], (B, caption_len), 0, vocab_size, jnp.int32)

    out = decoder_rnn_forward(features, captions, params)
    out = jax.block_until_ready(out)

    ref = _reference_forward(features, captions, params)
    assert out.shape == (B, caption_len, vocab_size)
    assert jnp.allclose(out, ref, atol=2e-4, rtol=2e-4), "mismatch vs JAX reference"

    print("KERNEL_OK")
</pallas_src>

<mosaic_0001>
module attributes {stable_mosaic.version = 11 : i64} {
  func.func @lstm_recurrence_kernel(%arg0: i32, %arg1: memref<8x8x128xf32, #tpu.memory_space<vmem>>, %arg2: memref<256x512xf32, #tpu.memory_space<vmem>>, %arg3: memref<1x512xf32, #tpu.memory_space<vmem>>, %arg4: memref<8x8x128xf32, #tpu.memory_space<vmem>>, %arg5: memref<8x128xf32, #tpu.memory_space<vmem>>, %arg6: memref<8x128xf32, #tpu.memory_space<vmem>>) attributes {dimension_semantics = [#tpu.dimension_semantics<arbitrary>], iteration_bounds = array<i64: 1>, scalar_prefetch = 0 : i64, scratch_operands = 2 : i64, tpu.core_type = #tpu.core_type<tc>, window_params = [{transform_indices = @transform_0, window_bounds = array<i64: 8, 8, 128>}, {pipeline_mode = #tpu.pipeline_mode<synchronous>, transform_indices = @transform_1, window_bounds = array<i64: 256, 512>}, {pipeline_mode = #tpu.pipeline_mode<synchronous>, transform_indices = @transform_2, window_bounds = array<i64: 1, 512>}, {transform_indices = @transform_3, window_bounds = array<i64: 8, 8, 128>}]} {
    %c0_i32 = arith.constant 0 : i32
    %0 = arith.cmpi eq, %arg0, %c0_i32 : i32
    %1 = arith.extui %0 : i1 to i32
    %c0_i32_0 = arith.constant 0 : i32
    %2 = arith.cmpi ne, %1, %c0_i32_0 : i32
    scf.if %2 {
      %cst_84 = arith.constant 0.000000e+00 : f32
      %275 = vector.broadcast %cst_84 : f32 to vector<8x128xf32>
      %c0_85 = arith.constant 0 : index
      %c0_86 = arith.constant 0 : index
      %276 = vector.load %arg5[%c0_85, %c0_86] : memref<8x128xf32, #tpu.memory_space<vmem>>, vector<8x128xf32>
      tpu.vector_store %arg5[%c0_85, %c0_86], %275 {strides = array<i32>} : memref<8x128xf32, #tpu.memory_space<vmem>>, vector<8x128xf32>,
      %cst_87 = arith.constant 0.000000e+00 : f32
      %277 = vector.broadcast %cst_87 : f32 to vector<8x128xf32>
      %c0_88 = arith.constant 0 : index
      %c0_89 = arith.constant 0 : index
      %278 = vector.load %arg6[%c0_88, %c0_89] : memref<8x128xf32, #tpu.memory_space<vmem>>, vector<8x128xf32>
      tpu.vector_store %arg6[%c0_88, %c0_89], %277 {strides = array<i32>} : memref<8x128xf32, #tpu.memory_space<vmem>>, vector<8x128xf32>,
    } else {
    }
    %c0 = arith.constant 0 : index
    %c0_1 = arith.constant 0 : index
    %3 = vector.load %arg2[%c0, %c0_1] : memref<256x512xf32, #tpu.memory_space<vmem>>, vector<256x512xf32>
    %c0_2 = arith.constant 0 : index
    %c0_3 = arith.constant 0 : index
    %4 = vector.load %arg3[%c0_2, %c0_3] : memref<1x512xf32, #tpu.memory_space<vmem>>, vector<1x512xf32>
    %5 = vector.shape_cast %4 : vector<1x512xf32> to vector<1x512xf32>
    %6 = vector.broadcast %5 : vector<1x512xf32> to vector<8x512xf32>
    %c0_4 = arith.constant 0 : index
    %c0_5 = arith.constant 0 : index
    %7 = vector.load %arg5[%c0_4, %c0_5] : memref<8x128xf32, #tpu.memory_space<vmem>>, vector<8x128xf32>
    %c0_6 = arith.constant 0 : index
    %c0_7 = arith.constant 0 : index
    %8 = vector.load %arg6[%c0_6, %c0_7] : memref<8x128xf32, #tpu.memory_space<vmem>>, vector<8x128xf32>
    %c0_8 = arith.constant 0 : index
    %c0_9 = arith.constant 0 : index
    %c0_10 = arith.constant 0 : index
    %9 = vector.load %arg1[%c0_8, %c0_9, %c0_10] : memref<8x8x128xf32, #tpu.memory_space<vmem>>, vector<8x1x128xf32>
    %10 = vector.shape_cast %9 : vector<8x1x128xf32> to vector<8x128xf32>
    %11 = tpu.concatenate %10, %7 in 1 : vector<8x128xf32>, vector<8x128xf32> -> vector<8x256xf32>
    %cst = arith.constant dense<0.000000e+00> : vector<8x512xf32>
    %12 = tpu.matmul %11, %3, %cst {dimension_numbers = #tpu.dot_dimension_numbers<[1], [0], [0], [1], [0, 0, 1, 1], [], []>} : vector<8x256xf32>, vector<256x512xf32>, vector<8x512xf32> -> vector<8x512xf32>
    %13 = arith.addf %12, %6 : vector<8x512xf32>
    %14 = vector.extract_strided_slice %13 {offsets = [0, 0], sizes = [8, 128], strides = [1, 1]} : vector<8x512xf32> to vector<8x128xf32>
    %15 = arith.negf %14 : vector<8x128xf32>
    %16 = math.exp %15 : vector<8x128xf32>
    %cst_11 = arith.constant 1.000000e+00 : f32
    %17 = vector.broadcast %cst_11 : f32 to vector<8x128xf32>
    %18 = arith.addf %17, %16 : vector<8x128xf32>
    %19 = arith.divf %17, %18 : vector<8x128xf32>
    %20 = vector.extract_strided_slice %13 {offsets = [0, 128], sizes = [8, 128], strides = [1, 1]} : vector<8x512xf32> to vector<8x128xf32>
    %21 = arith.negf %20 : vector<8x128xf32>
    %22 = math.exp %21 : vector<8x128xf32>
    %cst_12 = arith.constant 1.000000e+00 : f32
    %23 = vector.broadcast %cst_12 : f32 to vector<8x128xf32>
    %24 = arith.addf %23, %22 : vector<8x128xf32>
    %25 = arith.divf %23, %24 : vector<8x128xf32>
    %26 = vector.extract_strided_slice %13 {offsets = [0, 256], sizes = [8, 128], strides = [1, 1]} : vector<8x512xf32> to vector<8x128xf32>
    %27 = math.tanh %26 : vector<8x128xf32>
    %28 = vector.extract_strided_slice %13 {offsets = [0, 384], sizes = [8, 128], strides = [1, 1]} : vector<8x512xf32> to vector<8x128xf32>
    %29 = arith.negf %28 : vector<8x128xf32>
    %30 = math.exp %29 : vector<8x128xf32>
    %cst_13 = arith.constant 1.000000e+00 : f32
    %31 = vector.broadcast %cst_13 : f32 to vector<8x128xf32>
    %32 = arith.addf %31, %30 : vector<8x128xf32>
    %33 = arith.divf %31, %32 : vector<8x128xf32>
    %34 = arith.mulf %25, %8 : vector<8x128xf32>
    %35 = arith.mulf %19, %27 : vector<8x128xf32>
    %36 = arith.addf %34, %35 : vector<8x128xf32>
    %37 = math.tanh %36 : vector<8x128xf32>
    %38 = arith.mulf %33, %37 : vector<8x128xf32>
    %c0_14 = arith.constant 0 : index
    %c0_15 = arith.constant 0 : index
    %c0_16 = arith.constant 0 : index
    %39 = vector.load %arg4[%c0_14, %c0_15, %c0_16] : memref<8x8x128xf32, #tpu.memory_space<vmem>>, vector<8x1x128xf32>
    %40 = vector.shape_cast %39 : vector<8x1x128xf32> to vector<8x128xf32>
    %41 = vector.shape_cast %38 : vector<8x128xf32> to vector<8x1x128xf32>
    tpu.vector_store %arg4[%c0_14, %c0_15, %c0_16], %41 {strides = array<i32>} : memref<8x8x128xf32, #tpu.memory_space<vmem>>, vector<8x1x128xf32>,
    %c0_17 = arith.constant 0 : index
    %c1 = arith.constant 1 : index
    %c0_18 = arith.constant 0 : index
    %42 = vector.load %arg1[%c0_17, %c1, %c0_18] : memref<8x8x128xf32, #tpu.memory_space<vmem>>, vector<8x1x128xf32>
    %43 = vector.shape_cast %42 : vector<8x1x128xf32> to vector<8x128xf32>
    %44 = tpu.concatenate %43, %38 in 1 : vector<8x128xf32>, vector<8x128xf32> -> vector<8x256xf32>
    %cst_19 = arith.constant dense<0.000000e+00> : vector<8x512xf32>
    %45 = tpu.matmul %44, %3, %cst_19 {dimension_numbers = #tpu.dot_dimension_numbers<[1], [0], [0], [1], [0, 0, 1, 1], [], []>} : vector<8x256xf32>, vector<256x512xf32>, vector<8x512xf32> -> vector<8x512xf32>
    %46 = arith.addf %45, %6 : vector<8x512xf32>
    %47 = vector.extract_strided_slice %46 {offsets = [0, 0], sizes = [8, 128], strides = [1, 1]} : vector<8x512xf32> to vector<8x128xf32>
    %48 = arith.negf %47 : vector<8x128xf32>
    %49 = math.exp %48 : vector<8x128xf32>
    %cst_20 = arith.constant 1.000000e+00 : f32
    %50 = vector.broadcast %cst_20 : f32 to vector<8x128xf32>
    %51 = arith.addf %50, %49 : vector<8x128xf32>
    %52 = arith.divf %50, %51 : vector<8x128xf32>
    %53 = vector.extract_strided_slice %46 {offsets = [0, 128], sizes = [8, 128], strides = [1, 1]} : vector<8x512xf32> to vector<8x128xf32>
    %54 = arith.negf %53 : vector<8x128xf32>
    %55 = math.exp %54 : vector<8x128xf32>
    %cst_21 = arith.constant 1.000000e+00 : f32
    %56 = vector.broadcast %cst_21 : f32 to vector<8x128xf32>
    %57 = arith.addf %56, %55 : vector<8x128xf32>
    %58 = arith.divf %56, %57 : vector<8x128xf32>
    %59 = vector.extract_strided_slice %46 {offsets = [0, 256], sizes = [8, 128], strides = [1, 1]} : vector<8x512xf32> to vector<8x128xf32>
    %60 = math.tanh %59 : vector<8x128xf32>
    %61 = vector.extract_strided_slice %46 {offsets = [0, 384], sizes = [8, 128], strides = [1, 1]} : vector<8x512xf32> to vector<8x128xf32>
    %62 = arith.negf %61 : vector<8x128xf32>
    %63 = math.exp %62 : vector<8x128xf32>
    %cst_22 = arith.constant 1.000000e+00 : f32
    %64 = vector.broadcast %cst_22 : f32 to vector<8x128xf32>
    %65 = arith.addf %64, %63 : vector<8x128xf32>
    %66 = arith.divf %64, %65 : vector<8x128xf32>
    %67 = arith.mulf %58, %36 : vector<8x128xf32>
    %68 = arith.mulf %52, %60 : vector<8x128xf32>
    %69 = arith.addf %67, %68 : vector<8x128xf32>
    %70 = math.tanh %69 : vector<8x128xf32>
    %71 = arith.mulf %66, %70 : vector<8x128xf32>
    %c0_23 = arith.constant 0 : index
    %c1_24 = arith.constant 1 : index
    %c0_25 = arith.constant 0 : index
    %72 = vector.load %arg4[%c0_23, %c1_24, %c0_25] : memref<8x8x128xf32, #tpu.memory_space<vmem>>, vector<8x1x128xf32>
    %73 = vector.shape_cast %72 : vector<8x1x128xf32> to vector<8x128xf32>
    %74 = vector.shape_cast %71 : vector<8x128xf32> to vector<8x1x128xf32>
    tpu.vector_store %arg4[%c0_23, %c1_24, %c0_25], %74 {strides = array<i32>} : memref<8x8x128xf32, #tpu.memory_space<vmem>>, vector<8x1x128xf32>,
    %c0_26 = arith.constant 0 : index
    %c2 = arith.constant 2 : index
    %c0_27 = arith.constant 0 : index
    %75 = vector.load %arg1[%c0_26, %c2, %c0_27] : memref<8x8x128xf32, #tpu.memory_space<vmem>>, vector<8x1x128xf32>
    %76 = vector.shape_cast %75 : vector<8x1x128xf32> to vector<8x128xf32>
    %77 = tpu.concatenate %76, %71 in 1 : vector<8x128xf32>, vector<8x128xf32> -> vector<8x256xf32>
    %cst_28 = arith.constant dense<0.000000e+00> : vector<8x512xf32>
    %78 = tpu.matmul %77, %3, %cst_28 {dimension_numbers = #tpu.dot_dimension_numbers<[1], [0], [0], [1], [0, 0, 1, 1], [], []>} : vector<8x256xf32>, vector<256x512xf32>, vector<8x512xf32> -> vector<8x512xf32>
    %79 = arith.addf %78, %6 : vector<8x512xf32>
    %80 = vector.extract_strided_slice %79 {offsets = [0, 0], sizes = [8, 128], strides = [1, 1]} : vector<8x512xf32> to vector<8x128xf32>
    %81 = arith.negf %80 : vector<8x128xf32>
    %82 = math.exp %81 : vector<8x128xf32>
    %cst_29 = arith.constant 1.000000e+00 : f32
    %83 = vector.broadcast %cst_29 : f32 to vector<8x128xf32>
    %84 = arith.addf %83, %82 : vector<8x128xf32>
    %85 = arith.divf %83, %84 : vector<8x128xf32>
    %86 = vector.extract_strided_slice %79 {offsets = [0, 128], sizes = [8, 128], strides = [1, 1]} : vector<8x512xf32> to vector<8x128xf32>
    %87 = arith.negf %86 : vector<8x128xf32>
    %88 = math.exp %87 : vector<8x128xf32>
    %cst_30 = arith.constant 1.000000e+00 : f32
    %89 = vector.broadcast %cst_30 : f32 to vector<8x128xf32>
    %90 = arith.addf %89, %88 : vector<8x128xf32>
    %91 = arith.divf %89, %90 : vector<8x128xf32>
    %92 = vector.extract_strided_slice %79 {offsets = [0, 256], sizes = [8, 128], strides = [1, 1]} : vector<8x512xf32> to vector<8x128xf32>
    %93 = math.tanh %92 : vector<8x128xf32>
    %94 = vector.extract_strided_slice %79 {offsets = [0, 384], sizes = [8, 128], strides = [1, 1]} : vector<8x512xf32> to vector<8x128xf32>
    %95 = arith.negf %94 : vector<8x128xf32>
    %96 = math.exp %95 : vector<8x128xf32>
    %cst_31 = arith.constant 1.000000e+00 : f32
    %97 = vector.broadcast %cst_31 : f32 to vector<8x128xf32>
    %98 = arith.addf %97, %96 : vector<8x128xf32>
    %99 = arith.divf %97, %98 : vector<8x128xf32>
    %100 = arith.mulf %91, %69 : vector<8x128xf32>
    %101 = arith.mulf %85, %93 : vector<8x128xf32>
    %102 = arith.addf %100, %101 : vector<8x128xf32>
    %103 = math.tanh %102 : vector<8x128xf32>
    %104 = arith.mulf %99, %103 : vector<8x128xf32>
    %c0_32 = arith.constant 0 : index
    %c2_33 = arith.constant 2 : index
    %c0_34 = arith.constant 0 : index
    %105 = vector.load %arg4[%c0_32, %c2_33, %c0_34] : memref<8x8x128xf32, #tpu.memory_space<vmem>>, vector<8x1x128xf32>
    %106 = vector.shape_cast %105 : vector<8x1x128xf32> to vector<8x128xf32>
    %107 = vector.shape_cast %104 : vector<8x128xf32> to vector<8x1x128xf32>
    tpu.vector_store %arg4[%c0_32, %c2_33, %c0_34], %107 {strides = array<i32>} : memref<8x8x128xf32, #tpu.memory_space<vmem>>, vector<8x1x128xf32>,
    %c0_35 = arith.constant 0 : index
    %c3 = arith.constant 3 : index
    %c0_36 = arith.constant 0 : index
    %108 = vector.load %arg1[%c0_35, %c3, %c0_36] : memref<8x8x128xf32, #tpu.memory_space<vmem>>, vector<8x1x128xf32>
    %109 = vector.shape_cast %108 : vector<8x1x128xf32> to vector<8x128xf32>
    %110 = tpu.concatenate %109, %104 in 1 : vector<8x128xf32>, vector<8x128xf32> -> vector<8x256xf32>
    %cst_37 = arith.constant dense<0.000000e+00> : vector<8x512xf32>
    %111 = tpu.matmul %110, %3, %cst_37 {dimension_numbers = #tpu.dot_dimension_numbers<[1], [0], [0], [1], [0, 0, 1, 1], [], []>} : vector<8x256xf32>, vector<256x512xf32>, vector<8x512xf32> -> vector<8x512xf32>
    %112 = arith.addf %111, %6 : vector<8x512xf32>
    %113 = vector.extract_strided_slice %112 {offsets = [0, 0], sizes = [8, 128], strides = [1, 1]} : vector<8x512xf32> to vector<8x128xf32>
    %114 = arith.negf %113 : vector<8x128xf32>
    %115 = math.exp %114 : vector<8x128xf32>
    %cst_38 = arith.constant 1.000000e+00 : f32
    %116 = vector.broadcast %cst_38 : f32 to vector<8x128xf32>
    %117 = arith.addf %116, %115 : vector<8x128xf32>
    %118 = arith.divf %116, %117 : vector<8x128xf32>
    %119 = vector.extract_strided_slice %112 {offsets = [0, 128], sizes = [8, 128], strides = [1, 1]} : vector<8x512xf32> to vector<8x128xf32>
    %120 = arith.negf %119 : vector<8x128xf32>
    %121 = math.exp %120 : vector<8x128xf32>
    %cst_39 = arith.constant 1.000000e+00 : f32
    %122 = vector.broadcast %cst_39 : f32 to vector<8x128xf32>
    %123 = arith.addf %122, %121 : vector<8x128xf32>
    %124 = arith.divf %122, %123 : vector<8x128xf32>
    %125 = vector.extract_strided_slice %112 {offsets = [0, 256], sizes = [8, 128], strides = [1, 1]} : vector<8x512xf32> to vector<8x128xf32>
    %126 = math.tanh %125 : vector<8x128xf32>
    %127 = vector.extract_strided_slice %112 {offsets = [0, 384], sizes = [8, 128], strides = [1, 1]} : vector<8x512xf32> to vector<8x128xf32>
    %128 = arith.negf %127 : vector<8x128xf32>
    %129 = math.exp %128 : vector<8x128xf32>
    %cst_40 = arith.constant 1.000000e+00 : f32
    %130 = vector.broadcast %cst_40 : f32 to vector<8x128xf32>
    %131 = arith.addf %130, %129 : vector<8x128xf32>
    %132 = arith.divf %130, %131 : vector<8x128xf32>
    %133 = arith.mulf %124, %102 : vector<8x128xf32>
    %134 = arith.mulf %118, %126 : vector<8x128xf32>
    %135 = arith.addf %133, %134 : vector<8x128xf32>
    %136 = math.tanh %135 : vector<8x128xf32>
    %137 = arith.mulf %132, %136 : vector<8x128xf32>
    %c0_41 = arith.constant 0 : index
    %c3_42 = arith.constant 3 : index
    %c0_43 = arith.constant 0 : index
    %138 = vector.load %arg4[%c0_41, %c3_42, %c0_43] : memref<8x8x128xf32, #tpu.memory_space<vmem>>, vector<8x1x128xf32>
    %139 = vector.shape_cast %138 : vector<8x1x128xf32> to vector<8x128xf32>
    %140 = vector.shape_cast %137 : vector<8x128xf32> to vector<8x1x128xf32>
    tpu.vector_store %arg4[%c0_41, %c3_42, %c0_43], %140 {strides = array<i32>} : memref<8x8x128xf32, #tpu.memory_space<vmem>>, vector<8x1x128xf32>,
    %c0_44 = arith.constant 0 : index
    %c4 = arith.constant 4 : index
    %c0_45 = arith.constant 0 : index
    %141 = vector.load %arg1[%c0_44, %c4, %c0_45] : memref<8x8x128xf32, #tpu.memory_space<vmem>>, vector<8x1x128xf32>
    %142 = vector.shape_cast %141 : vector<8x1x128xf32> to vector<8x128xf32>
    %143 = tpu.concatenate %142, %137 in 1 : vector<8x128xf32>, vector<8x128xf32> -> vector<8x256xf32>
    %cst_46 = arith.constant dense<0.000000e+00> : vector<8x512xf32>
    %144 = tpu.matmul %143, %3, %cst_46 {dimension_numbers = #tpu.dot_dimension_numbers<[1], [0], [0], [1], [0, 0, 1, 1], [], []>} : vector<8x256xf32>, vector<256x512xf32>, vector<8x512xf32> -> vector<8x512xf32>
    %145 = arith.addf %144, %6 : vector<8x512xf32>
    %146 = vector.extract_strided_slice %145 {offsets = [0, 0], sizes = [8, 128], strides = [1, 1]} : vector<8x512xf32> to vector<8x128xf32>
    %147 = arith.negf %146 : vector<8x128xf32>
    %148 = math.exp %147 : vector<8x128xf32>
    %cst_47 = arith.constant 1.000000e+00 : f32
    %149 = vector.broadcast %cst_47 : f32 to vector<8x128xf32>
    %150 = arith.addf %149, %148 : vector<8x128xf32>
    %151 = arith.divf %149, %150 : vector<8x128xf32>
    %152 = vector.extract_strided_slice %145 {offsets = [0, 128], sizes = [8, 128], strides = [1, 1]} : vector<8x512xf32> to vector<8x128xf32>
    %153 = arith.negf %152 : vector<8x128xf32>
    %154 = math.exp %153 : vector<8x128xf32>
    %cst_48 = arith.constant 1.000000e+00 : f32
    %155 = vector.broadcast %cst_48 : f32 to vector<8x128xf32>
    %156 = arith.addf %155, %154 : vector<8x128xf32>
    %157 = arith.divf %155, %156 : vector<8x128xf32>
    %158 = vector.extract_strided_slice %145 {offsets = [0, 256], sizes = [8, 128], strides = [1, 1]} : vector<8x512xf32> to vector<8x128xf32>
    %159 = math.tanh %158 : vector<8x128xf32>
    %160 = vector.extract_strided_slice %145 {offsets = [0, 384], sizes = [8, 128], strides = [1, 1]} : vector<8x512xf32> to vector<8x128xf32>
    %161 = arith.negf %160 : vector<8x128xf32>
    %162 = math.exp %161 : vector<8x128xf32>
    %cst_49 = arith.constant 1.000000e+00 : f32
    %163 = vector.broadcast %cst_49 : f32 to vector<8x128xf32>
    %164 = arith.addf %163, %162 : vector<8x128xf32>
    %165 = arith.divf %163, %164 : vector<8x128xf32>
    %166 = arith.mulf %157, %135 : vector<8x128xf32>
    %167 = arith.mulf %151, %159 : vector<8x128xf32>
    %168 = arith.addf %166, %167 : vector<8x128xf32>
    %169 = math.tanh %168 : vector<8x128xf32>
    %170 = arith.mulf %165, %169 : vector<8x128xf32>
    %c0_50 = arith.constant 0 : index
    %c4_51 = arith.constant 4 : index
    %c0_52 = arith.constant 0 : index
    %171 = vector.load %arg4[%c0_50, %c4_51, %c0_52] : memref<8x8x128xf32, #tpu.memory_space<vmem>>, vector<8x1x128xf32>
    %172 = vector.shape_cast %171 : vector<8x1x128xf32> to vector<8x128xf32>
    %173 = vector.shape_cast %170 : vector<8x128xf32> to vector<8x1x128xf32>
    tpu.vector_store %arg4[%c0_50, %c4_51, %c0_52], %173 {strides = array<i32>} : memref<8x8x128xf32, #tpu.memory_space<vmem>>, vector<8x1x128xf32>,
    %c0_53 = arith.constant 0 : index
    %c5 = arith.constant 5 : index
    %c0_54 = arith.constant 0 : index
    %174 = vector.load %arg1[%c0_53, %c5, %c0_54] : memref<8x8x128xf32, #tpu.memory_space<vmem>>, vector<8x1x128xf32>
    %175 = vector.shape_cast %174 : vector<8x1x128xf32> to vector<8x128xf32>
    %176 = tpu.concatenate %175, %170 in 1 : vector<8x128xf32>, vector<8x128xf32> -> vector<8x256xf32>
    %cst_55 = arith.constant dense<0.000000e+00> : vector<8x512xf32>
    %177 = tpu.matmul %176, %3, %cst_55 {dimension_numbers = #tpu.dot_dimension_numbers<[1], [0], [0], [1], [0, 0, 1, 1], [], []>} : vector<8x256xf32>, vector<256x512xf32>, vector<8x512xf32> -> vector<8x512xf32>
    %178 = arith.addf %177, %6 : vector<8x512xf32>
    %179 = vector.extract_strided_slice %178 {offsets = [0, 0], sizes = [8, 128], strides = [1, 1]} : vector<8x512xf32> to vector<8x128xf32>
    %180 = arith.negf %179 : vector<8x128xf32>
    %181 = math.exp %180 : vector<8x128xf32>
    %cst_56 = arith.constant 1.000000e+00 : f32
    %182 = vector.broadcast %cst_56 : f32 to vector<8x128xf32>
    %183 = arith.addf %182, %181 : vector<8x128xf32>
    %184 = arith.divf %182, %183 : vector<8x128xf32>
    %185 = vector.extract_strided_slice %178 {offsets = [0, 128], sizes = [8, 128], strides = [1, 1]} : vector<8x512xf32> to vector<8x128xf32>
    %186 = arith.negf %185 : vector<8x128xf32>
    %187 = math.exp %186 : vector<8x128xf32>
    %cst_57 = arith.constant 1.000000e+00 : f32
    %188 = vector.broadcast %cst_57 : f32 to vector<8x128xf32>
    %189 = arith.addf %188, %187 : vector<8x128xf32>
    %190 = arith.divf %188, %189 : vector<8x128xf32>
    %191 = vector.extract_strided_slice %178 {offsets = [0, 256], sizes = [8, 128], strides = [1, 1]} : vector<8x512xf32> to vector<8x128xf32>
    %192 = math.tanh %191 : vector<8x128xf32>
    %193 = vector.extract_strided_slice %178 {offsets = [0, 384], sizes = [8, 128], strides = [1, 1]} : vector<8x512xf32> to vector<8x128xf32>
    %194 = arith.negf %193 : vector<8x128xf32>
    %195 = math.exp %194 : vector<8x128xf32>
    %cst_58 = arith.constant 1.000000e+00 : f32
    %196 = vector.broadcast %cst_58 : f32 to vector<8x128xf32>
    %197 = arith.addf %196, %195 : vector<8x128xf32>
    %198 = arith.divf %196, %197 : vector<8x128xf32>
    %199 = arith.mulf %190, %168 : vector<8x128xf32>
    %200 = arith.mulf %184, %192 : vector<8x128xf32>
    %201 = arith.addf %199, %200 : vector<8x128xf32>
    %202 = math.tanh %201 : vector<8x128xf32>
    %203 = arith.mulf %198, %202 : vector<8x128xf32>
    %c0_59 = arith.constant 0 : index
    %c5_60 = arith.constant 5 : index
    %c0_61 = arith.constant 0 : index
    %204 = vector.load %arg4[%c0_59, %c5_60, %c0_61] : memref<8x8x128xf32, #tpu.memory_space<vmem>>, vector<8x1x128xf32>
    %205 = vector.shape_cast %204 : vector<8x1x128xf32> to vector<8x128xf32>
    %206 = vector.shape_cast %203 : vector<8x128xf32> to vector<8x1x128xf32>
    tpu.vector_store %arg4[%c0_59, %c5_60, %c0_61], %206 {strides = array<i32>} : memref<8x8x128xf32, #tpu.memory_space<vmem>>, vector<8x1x128xf32>,
    %c0_62 = arith.constant 0 : index
    %c6 = arith.constant 6 : index
    %c0_63 = arith.constant 0 : index
    %207 = vector.load %arg1[%c0_62, %c6, %c0_63] : memref<8x8x128xf32, #tpu.memory_space<vmem>>, vector<8x1x128xf32>
    %208 = vector.shape_cast %207 : vector<8x1x128xf32> to vector<8x128xf32>
    %209 = tpu.concatenate %208, %203 in 1 : vector<8x128xf32>, vector<8x128xf32> -> vector<8x256xf32>
    %cst_64 = arith.constant dense<0.000000e+00> : vector<8x512xf32>
    %210 = tpu.matmul %209, %3, %cst_64 {dimension_numbers = #tpu.dot_dimension_numbers<[1], [0], [0], [1], [0, 0, 1, 1], [], []>} : vector<8x256xf32>, vector<256x512xf32>, vector<8x512xf32> -> vector<8x512xf32>
    %211 = arith.addf %210, %6 : vector<8x512xf32>
    %212 = vector.extract_strided_slice %211 {offsets = [0, 0], sizes = [8, 128], strides = [1, 1]} : vector<8x512xf32> to vector<8x128xf32>
    %213 = arith.negf %212 : vector<8x128xf32>
    %214 = math.exp %213 : vector<8x128xf32>
    %cst_65 = arith.constant 1.000000e+00 : f32
    %215 = vector.broadcast %cst_65 : f32 to vector<8x128xf32>
    %216 = arith.addf %215, %214 : vector<8x128xf32>
    %217 = arith.divf %215, %216 : vector<8x128xf32>
    %218 = vector.extract_strided_slice %211 {offsets = [0, 128], sizes = [8, 128], strides = [1, 1]} : vector<8x512xf32> to vector<8x128xf32>
    %219 = arith.negf %218 : vector<8x128xf32>
    %220 = math.exp %219 : vector<8x128xf32>
    %cst_66 = arith.constant 1.000000e+00 : f32
    %221 = vector.broadcast %cst_66 : f32 to vector<8x128xf32>
    %222 = arith.addf %221, %220 : vector<8x128xf32>
    %223 = arith.divf %221, %222 : vector<8x128xf32>
    %224 = vector.extract_strided_slice %211 {offsets = [0, 256], sizes = [8, 128], strides = [1, 1]} : vector<8x512xf32> to vector<8x128xf32>
    %225 = math.tanh %224 : vector<8x128xf32>
    %226 = vector.extract_strided_slice %211 {offsets = [0, 384], sizes = [8, 128], strides = [1, 1]} : vector<8x512xf32> to vector<8x128xf32>
    %227 = arith.negf %226 : vector<8x128xf32>
    %228 = math.exp %227 : vector<8x128xf32>
    %cst_67 = arith.constant 1.000000e+00 : f32
    %229 = vector.broadcast %cst_67 : f32 to vector<8x128xf32>
    %230 = arith.addf %229, %228 : vector<8x128xf32>
    %231 = arith.divf %229, %230 : vector<8x128xf32>
    %232 = arith.mulf %223, %201 : vector<8x128xf32>
    %233 = arith.mulf %217, %225 : vector<8x128xf32>
    %234 = arith.addf %232, %233 : vector<8x128xf32>
    %235 = math.tanh %234 : vector<8x128xf32>
    %236 = arith.mulf %231, %235 : vector<8x128xf32>
    %c0_68 = arith.constant 0 : index
    %c6_69 = arith.constant 6 : index
    %c0_70 = arith.constant 0 : index
    %237 = vector.load %arg4[%c0_68, %c6_69, %c0_70] : memref<8x8x128xf32, #tpu.memory_space<vmem>>, vector<8x1x128xf32>
    %238 = vector.shape_cast %237 : vector<8x1x128xf32> to vector<8x128xf32>
    %239 = vector.shape_cast %236 : vector<8x128xf32> to vector<8x1x128xf32>
    tpu.vector_store %arg4[%c0_68, %c6_69, %c0_70], %239 {strides = array<i32>} : memref<8x8x128xf32, #tpu.memory_space<vmem>>, vector<8x1x128xf32>,
    %c0_71 = arith.constant 0 : index
    %c7 = arith.constant 7 : index
    %c0_72 = arith.constant 0 : index
    %240 = vector.load %arg1[%c0_71, %c7, %c0_72] : memref<8x8x128xf32, #tpu.memory_space<vmem>>, vector<8x1x128xf32>
    %241 = vector.shape_cast %240 : vector<8x1x128xf32> to vector<8x128xf32>
    %242 = tpu.concatenate %241, %236 in 1 : vector<8x128xf32>, vector<8x128xf32> -> vector<8x256xf32>
    %cst_73 = arith.constant dense<0.000000e+00> : vector<8x512xf32>
    %243 = tpu.matmul %242, %3, %cst_73 {dimension_numbers = #tpu.dot_dimension_numbers<[1], [0], [0], [1], [0, 0, 1, 1], [], []>} : vector<8x256xf32>, vector<256x512xf32>, vector<8x512xf32> -> vector<8x512xf32>
    %244 = arith.addf %243, %6 : vector<8x512xf32>
    %245 = vector.extract_strided_slice %244 {offsets = [0, 0], sizes = [8, 128], strides = [1, 1]} : vector<8x512xf32> to vector<8x128xf32>
    %246 = arith.negf %245 : vector<8x128xf32>
    %247 = math.exp %246 : vector<8x128xf32>
    %cst_74 = arith.constant 1.000000e+00 : f32
    %248 = vector.broadcast %cst_74 : f32 to vector<8x128xf32>
    %249 = arith.addf %248, %247 : vector<8x128xf32>
    %250 = arith.divf %248, %249 : vector<8x128xf32>
    %251 = vector.extract_strided_slice %244 {offsets = [0, 128], sizes = [8, 128], strides = [1, 1]} : vector<8x512xf32> to vector<8x128xf32>
    %252 = arith.negf %251 : vector<8x128xf32>
    %253 = math.exp %252 : vector<8x128xf32>
    %cst_75 = arith.constant 1.000000e+00 : f32
    %254 = vector.broadcast %cst_75 : f32 to vector<8x128xf32>
    %255 = arith.addf %254, %253 : vector<8x128xf32>
    %256 = arith.divf %254, %255 : vector<8x128xf32>
    %257 = vector.extract_strided_slice %244 {offsets = [0, 256], sizes = [8, 128], strides = [1, 1]} : vector<8x512xf32> to vector<8x128xf32>
    %258 = math.tanh %257 : vector<8x128xf32>
    %259 = vector.extract_strided_slice %244 {offsets = [0, 384], sizes = [8, 128], strides = [1, 1]} : vector<8x512xf32> to vector<8x128xf32>
    %260 = arith.negf %259 : vector<8x128xf32>
    %261 = math.exp %260 : vector<8x128xf32>
    %cst_76 = arith.constant 1.000000e+00 : f32
    %262 = vector.broadcast %cst_76 : f32 to vector<8x128xf32>
    %263 = arith.addf %262, %261 : vector<8x128xf32>
    %264 = arith.divf %262, %263 : vector<8x128xf32>
    %265 = arith.mulf %256, %234 : vector<8x128xf32>
    %266 = arith.mulf %250, %258 : vector<8x128xf32>
    %267 = arith.addf %265, %266 : vector<8x128xf32>
    %268 = math.tanh %267 : vector<8x128xf32>
    %269 = arith.mulf %264, %268 : vector<8x128xf32>
    %c0_77 = arith.constant 0 : index
    %c7_78 = arith.constant 7 : index
    %c0_79 = arith.constant 0 : index
    %270 = vector.load %arg4[%c0_77, %c7_78, %c0_79] : memref<8x8x128xf32, #tpu.memory_space<vmem>>, vector<8x1x128xf32>
    %271 = vector.shape_cast %270 : vector<8x1x128xf32> to vector<8x128xf32>
    %272 = vector.shape_cast %269 : vector<8x128xf32> to vector<8x1x128xf32>
    tpu.vector_store %arg4[%c0_77, %c7_78, %c0_79], %272 {strides = array<i32>} : memref<8x8x128xf32, #tpu.memory_space<vmem>>, vector<8x1x128xf32>,
    %c0_80 = arith.constant 0 : index
    %c0_81 = arith.constant 0 : index
    %273 = vector.load %arg5[%c0_80, %c0_81] : memref<8x128xf32, #tpu.memory_space<vmem>>, vector<8x128xf32>
    tpu.vector_store %arg5[%c0_80, %c0_81], %269 {strides = array<i32>} : memref<8x128xf32, #tpu.memory_space<vmem>>, vector<8x128xf32>,
    %c0_82 = arith.constant 0 : index
    %c0_83 = arith.constant 0 : index
    %274 = vector.load %arg6[%c0_82, %c0_83] : memref<8x128xf32, #tpu.memory_space<vmem>>, vector<8x128xf32>
    tpu.vector_store %arg6[%c0_82, %c0_83], %267 {strides = array<i32>} : memref<8x128xf32, #tpu.memory_space<vmem>>, vector<8x128xf32>,
    return
  }
  func.func @transform_0(%arg0: i32) -> (i32, i32, i32) {
    %c0_i32 = arith.constant 0 : i32
    %c0_i32_0 = arith.constant 0 : i32
    %c0_i32_1 = arith.constant 0 : i32
    return %c0_i32, %arg0, %c0_i32_0 : i32, i32, i32
  }
  func.func @transform_1(%arg0: i32) -> (i32, i32) {
    %c0_i32 = arith.constant 0 : i32
    %c0_i32_0 = arith.constant 0 : i32
    %c0_i32_1 = arith.constant 0 : i32
    return %c0_i32, %c0_i32_0 : i32, i32
  }
  func.func @transform_2(%arg0: i32) -> (i32, i32) {
    %c0_i32 = arith.constant 0 : i32
    %c0_i32_0 = arith.constant 0 : i32
    %c0_i32_1 = arith.constant 0 : i32
    return %c0_i32, %c0_i32_0 : i32, i32
  }
  func.func @transform_3(%arg0: i32) -> (i32, i32, i32) {
    %c0_i32 = arith.constant 0 : i32
    %c0_i32_0 = arith.constant 0 : i32
    %c0_i32_1 = arith.constant 0 : i32
    return %c0_i32, %arg0, %c0_i32_0 : i32, i32, i32
  }
}

</mosaic_0001>

<llo_original>
// kernel: tpu_custom_call.1
$region0: #{tpu_custom_call.1}
  #allocation0 [shape = 'u32[]', space=smem, size = 0x4, offset = 0x4, fixed_abs, tag = 'smem constant byte address 0x4 - core index']
  #allocation1 [shape = 'u32[144,128]{1,0:T(1,128)}', space=vmem, size = 0x12000, scoped, tag = 'internal scratch']
  #allocation2 [shape = 'f32[8,128]{1,0:T(8,128)}', space=vmem, size = 0x1000, scoped, tag = 'scratch operand']
  #allocation3 [shape = 'f32[8,128]{1,0:T(8,128)}', space=vmem, size = 0x1000, scoped, tag = 'scratch operand']
  %s0 = inlined_call_operand.hbm [shape: f32[8,8,128], index: 0, kind: input, shape index: {}]
  %s1 = inlined_call_operand.hbm [shape: f32[256,512], index: 1, kind: input, shape index: {}]
  %s2 = inlined_call_operand.hbm [shape: f32[1,512], index: 2, kind: input, shape index: {}]
  %s3 = inlined_call_operand.hbm [shape: f32[8,8,128], index: 3, kind: output, shape index: {}]
  %s4 = sld [smem:[#allocation0]]
  $region38: #{tpu_custom_call.1} parent=0
    _
  %s6 = ssub.s32 1, %s4
  %s7 = scalar_select 0, %s6, %s4
  $region1: #{tpu_custom_call.1} parent=0
    #allocation4 [shape = 'u8[32768]{0}', space=vmem, size = 0x8000, scoped, tag = 'input window, operand 0, single buffered']
    #allocation5 [shape = 's32[1]{0}', space=sflag, size = 0x4, scoped, tag = 'scoped memory for tpu_custom_call.1']
    #allocation6 [shape = 's32[1]{0}', space=sflag, size = 0x4, scoped, tag = 'scoped memory for tpu_custom_call.1']
    #allocation7 [shape = 'u8[524288]{0}', space=vmem, size = 0x80000, scoped, tag = 'input window, operand 1, single buffered']
    #allocation8 [shape = 's32[1]{0}', space=sflag, size = 0x4, scoped, tag = 'scoped memory for tpu_custom_call.1']
    #allocation9 [shape = 'u8[2048]{0}', space=vmem, size = 0x800, scoped, tag = 'input window, operand 2, single buffered']
    #allocation10 [shape = 'u8[32768]{0}', space=vmem, size = 0x8000, scoped, tag = 'output window, operand 0, single buffered']
    %8 = vsyncpa [#allocation5], 0
    %9 = vsyncpa [#allocation8], 0
    %10 = vsyncpa [#allocation6], 0
    // Predicated region
    $region2: #{tpu_custom_call.1} parent=1 // pred_check
      _
    $region3: #{tpu_custom_call.1} parent=1 // pred_check_branch
      %12 = sbr.rel (0) target = $region5
    $region4: #{tpu_custom_call.1} parent=1 // pred_region
      %s14 = ssub.s32 1024, 1024
      %15 = vsyncadd [#allocation5], %s14
      %s16 = sshll.u32 [#allocation4], 4
      %s17 = int_to_ptr.vmem [resolvable:$true] %s16
      %22 = dma.hbm_to_vmem [thread:$0]  %s0, 1024, %s17, [#allocation5], 128, 128, 8
    $region5: #{tpu_custom_call.1} parent=1 // pred_fallthru
      _
    // Predicated region
    $region6: #{tpu_custom_call.1} parent=1 // pred_check
      _
    $region7: #{tpu_custom_call.1} parent=1 // pred_check_branch
      %24 = sbr.rel (0) target = $region9
    $region8: #{tpu_custom_call.1} parent=1 // pred_region
      %s26 = ssub.s32 16384, 16384
      %27 = vsyncadd [#allocation8], %s26
      %s28 = sshll.u32 [#allocation7], 4
      %s29 = int_to_ptr.vmem [resolvable:$true] %s28
      %34 = dma.hbm_to_vmem [thread:$0]  %s1, 16384, %s29, [#allocation8], 512, 512, 32
    $region9: #{tpu_custom_call.1} parent=1 // pred_fallthru
      _
    // Predicated region
    $region10: #{tpu_custom_call.1} parent=1 // pred_check
      _
    $region11: #{tpu_custom_call.1} parent=1 // pred_check_branch
      %36 = sbr.rel (0) target = $region13
    $region12: #{tpu_custom_call.1} parent=1 // pred_region
      %s38 = ssub.s32 64, 64
      %39 = vsyncadd [#allocation8], %s38
      %s41 = sshll.u32 [#allocation9], 4
      %s42 = int_to_ptr.vmem [resolvable:$true] %s41
      %44 = dma.hbm_to_vmem [thread:$0]  %s2, 64, %s42, [#allocation8]
    $region13: #{tpu_custom_call.1} parent=1 // pred_fallthru
      _
    // Predicated region
    $region14: #{tpu_custom_call.1} parent=1 // pred_check
      _
    $region15: #{tpu_custom_call.1} parent=1 // pred_check_branch
      %46 = sbr.rel (0) target = $region17
    $region16: #{tpu_custom_call.1} parent=1 // pred_region
      %47 = dma.done [#allocation5], 1024
    $region17: #{tpu_custom_call.1} parent=1 // pred_fallthru
      _
    // Predicated region
    $region18: #{tpu_custom_call.1} parent=1 // pred_check
      _
    $region19: #{tpu_custom_call.1} parent=1 // pred_check_branch
      %49 = sbr.rel (0) target = $region21
    $region20: #{tpu_custom_call.1} parent=1 // pred_region
      %50 = dma.done [#allocation8], 16384
    $region21: #{tpu_custom_call.1} parent=1 // pred_fallthru
      _
    // Predicated region
    $region22: #{tpu_custom_call.1} parent=1 // pred_check
      _
    $region23: #{tpu_custom_call.1} parent=1 // pred_check_branch
      %52 = sbr.rel (0) target = $region25
    $region24: #{tpu_custom_call.1} parent=1 // pred_region
      %53 = dma.done [#allocation8], 64
    $region25: #{tpu_custom_call.1} parent=1 // pred_fallthru
      _
    %p54 = scmp.eq.s32.totalorder 0, 0
    // Predicated region
    $region26: #{tpu_custom_call.1} parent=1 // pred_check
      %p55 = pneg %p54
    $region27: #{tpu_custom_call.1} parent=1 // pred_check_branch
      %57 = sbr.rel (%p55) target = $region29
    $region28: #{tpu_custom_call.1} parent=1 // pred_region
      %58 = vst [vmem:[#allocation2] sm:$0xff] 0.0
      %59 = vst [vmem:[#allocation3] sm:$0xff] 0.0
    $region29: #{tpu_custom_call.1} parent=1 // pred_fallthru
      _
    %v60 = vld [vmem:[#allocation7] sm:$0xff]
    %v61 = vld [vmem:[#allocation7 + $0x8] sm:$0xff]
    %v62 = vld [vmem:[#allocation7 + $0x10] sm:$0xff]
    %v63 = vld [vmem:[#allocation7 + $0x18] sm:$0xff]
    %v64 = vld [vmem:[#allocation7 + $0x20] sm:$0xff]
    %v65 = vld [vmem:[#allocation7 + $0x28] sm:$0xff]
    %v66 = vld [vmem:[#allocation7 + $0x30] sm:$0xff]
    %v67 = vld [vmem:[#allocation7 + $0x38] sm:$0xff]
    %v68 = vld [vmem:[#allocation7 + $0x40] sm:$0xff]
    %v69 = vld [vmem:[#allocation7 + $0x48] sm:$0xff]
    %v70 = vld [vmem:[#allocation7 + $0x50] sm:$0xff]
    %v71 = vld [vmem:[#allocation7 + $0x58] sm:$0xff]
    %v72 = vld [vmem:[#allocation7 + $0x60] sm:$0xff]
    %v73 = vld [vmem:[#allocation7 + $0x68] sm:$0xff]
    %v74 = vld [vmem:[#allocation7 + $0x70] sm:$0xff]
    %v75 = vld [vmem:[#allocation7 + $0x78] sm:$0xff]
    %v76 = vld [vmem:[#allocation7 + $0x80] sm:$0xff]
    %v77 = vld [vmem:[#allocation7 + $0x88] sm:$0xff]
    %v78 = vld [vmem:[#allocation7 + $0x90] sm:$0xff]
    %v79 = vld [vmem:[#allocation7 + $0x98] sm:$0xff]
    %v80 = vld [vmem:[#allocation7 + $0xa0] sm:$0xff]
    %v81 = vld [vmem:[#allocation7 + $0xa8] sm:$0xff]
    %v82 = vld [vmem:[#allocation7 + $0xb0] sm:$0xff]
    %v83 = vld [vmem:[#allocation7 + $0xb8] sm:$0xff]
    %v84 = vld [vmem:[#allocation7 + $0xc0] sm:$0xff]
    %v85 = vld [vmem:[#allocation7 + $0xc8] sm:$0xff]
    %v86 = vld [vmem:[#allocation7 + $0xd0] sm:$0xff]
    %v87 = vld [vmem:[#allocation7 + $0xd8] sm:$0xff]
    %v88 = vld [vmem:[#allocation7 + $0xe0] sm:$0xff]
    %v89 = vld [vmem:[#allocation7 + $0xe8] sm:$0xff]
    %v90 = vld [vmem:[#allocation7 + $0xf0] sm:$0xff]
    %v91 = vld [vmem:[#allocation7 + $0xf8] sm:$0xff]
    %v92 = vld [vmem:[#allocation7 + $0x100] sm:$0xff]
    %v93 = vld [vmem:[#allocation7 + $0x108] sm:$0xff]
    %v94 = vld [vmem:[#allocation7 + $0x110] sm:$0xff]
    %v95 = vld [vmem:[#allocation7 + $0x118] sm:$0xff]
    %v96 = vld [vmem:[#allocation7 + $0x120] sm:$0xff]
    %v97 = vld [vmem:[#allocation7 + $0x128] sm:$0xff]
    %v98 = vld [vmem:[#allocation7 + $0x130] sm:$0xff]
    %v99 = vld [vmem:[#allocation7 + $0x138] sm:$0xff]
    %v100 = vld [vmem:[#allocation7 + $0x140] sm:$0xff]
    %v101 = vld [vmem:[#allocation7 + $0x148] sm:$0xff]
    %v102 = vld [vmem:[#allocation7 + $0x150] sm:$0xff]
    %v103 = vld [vmem:[#allocation7 + $0x158] sm:$0xff]
    %v104 = vld [vmem:[#allocation7 + $0x160] sm:$0xff]
    %v105 = vld [vmem:[#allocation7 + $0x168] sm:$0xff]
    %v106 = vld [vmem:[#allocation7 + $0x170] sm:$0xff]
    %v107 = vld [vmem:[#allocation7 + $0x178] sm:$0xff]
    %v108 = vld [vmem:[#allocation7 + $0x180] sm:$0xff]
    %v109 = vld [vmem:[#allocation7 + $0x188] sm:$0xff]
    %v110 = vld [vmem:[#allocation7 + $0x190] sm:$0xff]
    %v111 = vld [vmem:[#allocation7 + $0x198] sm:$0xff]
    %v112 = vld [vmem:[#allocation7 + $0x1a0] sm:$0xff]
    %v113 = vld [vmem:[#allocation7 + $0x1a8] sm:$0xff]
    %v114 = vld [vmem:[#allocation7 + $0x1b0] sm:$0xff]
    %v115 = vld [vmem:[#allocation7 + $0x1b8] sm:$0xff]
    %v116 = vld [vmem:[#allocation7 + $0x1c0] sm:$0xff]
    %v117 = vld [vmem:[#allocation7 + $0x1c8] sm:$0xff]
    %v118 = vld [vmem:[#allocation7 + $0x1d0] sm:$0xff]
    %v119 = vld [vmem:[#allocation7 + $0x1d8] sm:$0xff]
    %v120 = vld [vmem:[#allocation7 + $0x1e0] sm:$0xff]
    %v121 = vld [vmem:[#allocation7 + $0x1e8] sm:$0xff]
    %v122 = vld [vmem:[#allocation7 + $0x1f0] sm:$0xff]
    %v123 = vld [vmem:[#allocation7 + $0x1f8] sm:$0xff]
    %v124 = vld [vmem:[#allocation7 + $0x200] sm:$0xff]
    %v125 = vld [vmem:[#allocation7 + $0x208] sm:$0xff]
    %v126 = vld [vmem:[#allocation7 + $0x210] sm:$0xff]
    %v127 = vld [vmem:[#allocation7 + $0x218] sm:$0xff]
    %v128 = vld [vmem:[#allocation7 + $0x220] sm:$0xff]
    %v129 = vld [vmem:[#allocation7 + $0x228] sm:$0xff]
    %v130 = vld [vmem:[#allocation7 + $0x230] sm:$0xff]
    %v131 = vld [vmem:[#allocation7 + $0x238] sm:$0xff]
    %v132 = vld [vmem:[#allocation7 + $0x240] sm:$0xff]
    %v133 = vld [vmem:[#allocation7 + $0x248] sm:$0xff]
    %v134 = vld [vmem:[#allocation7 + $0x250] sm:$0xff]
    %v135 = vld [vmem:[#allocation7 + $0x258] sm:$0xff]
    %v136 = vld [vmem:[#allocation7 + $0x260] sm:$0xff]
    %v137 = vld [vmem:[#allocation7 + $0x268] sm:$0xff]
    %v138 = vld [vmem:[#allocation7 + $0x270] sm:$0xff]
    %v139 = vld [vmem:[#allocation7 + $0x278] sm:$0xff]
    %v140 = vld [vmem:[#allocation7 + $0x280] sm:$0xff]
    %v141 = vld [vmem:[#allocation7 + $0x288] sm:$0xff]
    %v142 = vld [vmem:[#allocation7 + $0x290] sm:$0xff]
    %v143 = vld [vmem:[#allocation7 + $0x298] sm:$0xff]
    %v144 = vld [vmem:[#allocation7 + $0x2a0] sm:$0xff]
    %v145 = vld [vmem:[#allocation7 + $0x2a8] sm:$0xff]
    %v146 = vld [vmem:[#allocation7 + $0x2b0] sm:$0xff]
    %v147 = vld [vmem:[#allocation7 + $0x2b8] sm:$0xff]
    %v148 = vld [vmem:[#allocation7 + $0x2c0] sm:$0xff]
    %v149 = vld [vmem:[#allocation7 + $0x2c8] sm:$0xff]
    %v150 = vld [vmem:[#allocation7 + $0x2d0] sm:$0xff]
    %v151 = vld [vmem:[#allocation7 + $0x2d8] sm:$0xff]
    %v152 = vld [vmem:[#allocation7 + $0x2e0] sm:$0xff]
    %v153 = vld [vmem:[#allocation7 + $0x2e8] sm:$0xff]
    %v154 = vld [vmem:[#allocation7 + $0x2f0] sm:$0xff]
    %v155 = vld [vmem:[#allocation7 + $0x2f8] sm:$0xff]
    %v156 = vld [vmem:[#allocation7 + $0x300] sm:$0xff]
    %v157 = vld [vmem:[#allocation7 + $0x308] sm:$0xff]
    %v158 = vld [vmem:[#allocation7 + $0x310] sm:$0xff]
    %v159 = vld [vmem:[#allocation7 + $0x318] sm:$0xff]
    %v160 = vld [vmem:[#allocation7 + $0x320] sm:$0xff]
    %v161 = vld [vmem:[#allocation7 + $0x328] sm:$0xff]
    %v162 = vld [vmem:[#allocation7 + $0x330] sm:$0xff]
    %v163 = vld [vmem:[#allocation7 + $0x338] sm:$0xff]
    %v164 = vld [vmem:[#allocation7 + $0x340] sm:$0xff]
    %v165 = vld [vmem:[#allocation7 + $0x348] sm:$0xff]
    %v166 = vld [vmem:[#allocation7 + $0x350] sm:$0xff]
    %v167 = vld [vmem:[#allocation7 + $0x358] sm:$0xff]
    %v168 = vld [vmem:[#allocation7 + $0x360] sm:$0xff]
    %v169 = vld [vmem:[#allocation7 + $0x368] sm:$0xff]
    %v170 = vld [vmem:[#allocation7 + $0x370] sm:$0xff]
    %v171 = vld [vmem:[#allocation7 + $0x378] sm:$0xff]
    %v172 = vld [vmem:[#allocation7 + $0x380] sm:$0xff]
    %v173 = vld [vmem:[#allocation7 + $0x388] sm:$0xff]
    %v174 = vld [vmem:[#allocation7 + $0x390] sm:$0xff]
    %v175 = vld [vmem:[#allocation7 + $0x398] sm:$0xff]
    %v176 = vld [vmem:[#allocation7 + $0x3a0] sm:$0xff]
    %v177 = vld [vmem:[#allocation7 + $0x3a8] sm:$0xff]
    %v178 = vld [vmem:[#allocation7 + $0x3b0] sm:$0xff]
    %v179 = vld [vmem:[#allocation7 + $0x3b8] sm:$0xff]
    %v180 = vld [vmem:[#allocation7 + $0x3c0] sm:$0xff]
    %v181 = vld [vmem:[#allocation7 + $0x3c8] sm:$0xff]
    %v182 = vld [vmem:[#allocation7 + $0x3d0] sm:$0xff]
    %v183 = vld [vmem:[#allocation7 + $0x3d8] sm:$0xff]
    %v184 = vld [vmem:[#allocation7 + $0x3e0] sm:$0xff]
    %v185 = vld [vmem:[#allocation7 + $0x3e8] sm:$0xff]
    %v186 = vld [vmem:[#allocation7 + $0x3f0] sm:$0xff]
    %v187 = vld [vmem:[#allocation7 + $0x3f8] sm:$0xff]
    %v188 = vld [vmem:[#allocation9] sm:$0xf]
    %v190 = vlaneseq
    %v191 = vshrl.u32 %v190, 7
    %v192 = vsub.s32 0, %v191
    %v193 = vrot.slane %v188, %v192
    %v194 = vlaneseq
    %v195 = vshrl.u32 %v194, 7
    %v196 = vsub.s32 1, %v195
    %v197 = vrot.slane %v188, %v196
    %v198 = vlaneseq
    %v199 = vshrl.u32 %v198, 7
    %v200 = vsub.s32 2, %v199
    %v201 = vrot.slane %v188, %v200
    %v202 = vlaneseq
    %v203 = vshrl.u32 %v202, 7
    %v204 = vsub.s32 3, %v203
    %v205 = vrot.slane %v188, %v204
    %v210 = vld [vmem:[#allocation2] sm:$0xff]
    %v211 = vld [vmem:[#allocation3] sm:$0xff]
    %v212 = vld [vmem:[#allocation4] sm:$0x1]
    %v213 = vld [vmem:[#allocation4 + $0x8] sm:$0x1]
    %v214 = vld [vmem:[#allocation4 + $0x10] sm:$0x1]
    %v215 = vld [vmem:[#allocation4 + $0x18] sm:$0x1]
    %v216 = vld [vmem:[#allocation4 + $0x20] sm:$0x1]
    %v217 = vld [vmem:[#allocation4 + $0x28] sm:$0x1]
    %v218 = vld [vmem:[#allocation4 + $0x30] sm:$0x1]
    %v219 = vld [vmem:[#allocation4 + $0x38] sm:$0x1]
    %v228 = vrot.slane %v213, 7
    %vm229 = vcmask 1041409
    %v230 = vsel %vm229, %v228, %v212
    %v231 = vrot.slane %v214, 6
    %vm232 = vcmask 1042434
    %v233 = vsel %vm232, %v231, %v230
    %v234 = vrot.slane %v215, 5
    %vm235 = vcmask 1043459
    %v236 = vsel %vm235, %v234, %v233
    %v237 = vrot.slane %v216, 4
    %vm238 = vcmask 1044484
    %v239 = vsel %vm238, %v237, %v236
    %v240 = vrot.slane %v217, 3
    %vm241 = vcmask 1045509
    %v242 = vsel %vm241, %v240, %v239
    %v243 = vrot.slane %v218, 2
    %vm244 = vcmask 1046534
    %v245 = vsel %vm244, %v243, %v242
    %v246 = vrot.slane %v219, 1
    %vm247 = vcmask 1047559
    %v248 = vsel %vm247, %v246, %v245
    %250 = vmatprep.subr.mxu0 %v121
    %251 = vmatpush1.msra.mxu0 %v120
    %252 = vmatprep.subr.mxu0 %v117
    %253 = vmatpush1.msra.mxu0 %v116
    %254 = vmatprep.subr.mxu0 %v113
    %255 = vmatpush1.msra.mxu0 %v112
    %256 = vmatprep.subr.mxu0 %v109
    %257 = vmatpush1.msra.mxu0 %v108
    %258 = vmatprep.subr.mxu0 %v105
    %259 = vmatpush1.msra.mxu0 %v104
    %260 = vmatprep.subr.mxu0 %v101
    %261 = vmatpush1.msra.mxu0 %v100
    %262 = vmatprep.subr.mxu0 %v97
    %263 = vmatpush1.msra.mxu0 %v96
    %264 = vmatprep.subr.mxu0 %v93
    %265 = vmatpush1.msra.mxu0 %v92
    %266 = vmatprep.subr.mxu0 %v89
    %267 = vmatpush1.msra.mxu0 %v88
    %268 = vmatprep.subr.mxu0 %v85
    %269 = vmatpush1.msra.mxu0 %v84
    %270 = vmatprep.subr.mxu0 %v81
    %271 = vmatpush1.msra.mxu0 %v80
    %272 = vmatprep.subr.mxu0 %v77
    %273 = vmatpush1.msra.mxu0 %v76
    %274 = vmatprep.subr.mxu0 %v73
    %275 = vmatpush1.msra.mxu0 %v72
    %276 = vmatprep.subr.mxu0 %v69
    %277 = vmatpush1.msra.mxu0 %v68
    %278 = vmatprep.subr.mxu0 %v65
    %279 = vmatpush1.msra.mxu0 %v64
    %280 = vmatprep.subr.mxu0 %v61
    %281 = vmatpush1.msra.mxu0 %v60
    %282 = vmatprep.subr.mxu0 %v185
    %283 = vmatpush2.msra.mxu0 %v184
    %284 = vmatprep.subr.mxu0 %v181
    %285 = vmatpush2.msra.mxu0 %v180
    %286 = vmatprep.subr.mxu0 %v177
    %287 = vmatpush2.msra.mxu0 %v176
    %288 = vmatprep.subr.mxu0 %v173
    %289 = vmatpush2.msra.mxu0 %v172
    %290 = vmatprep.subr.mxu0 %v169
    %291 = vmatpush2.msra.mxu0 %v168
    %292 = vmatprep.subr.mxu0 %v165
    %293 = vmatpush2.msra.mxu0 %v164
    %294 = vmatprep.subr.mxu0 %v161
    %295 = vmatpush2.msra.mxu0 %v160
    %296 = vmatprep.subr.mxu0 %v157
    %297 = vmatpush2.msra.mxu0 %v156
    %298 = vmatprep.subr.mxu0 %v153
    %299 = vmatpush2.msra.mxu0 %v152
    %300 = vmatprep.subr.mxu0 %v149
    %301 = vmatpush2.msra.mxu0 %v148
    %302 = vmatprep.subr.mxu0 %v145
    %303 = vmatpush2.msra.mxu0 %v144
    %304 = vmatprep.subr.mxu0 %v141
    %305 = vmatpush2.msra.mxu0 %v140
    %306 = vmatprep.subr.mxu0 %v137
    %307 = vmatpush2.msra.mxu0 %v136
    %308 = vmatprep.subr.mxu0 %v133
    %309 = vmatpush2.msra.mxu0 %v132
    %310 = vmatprep.subr.mxu0 %v129
    %311 = vmatpush2.msra.mxu0 %v128
    %312 = vmatprep.subr.mxu0 %v125
    %313 = vmatpush2.msra.mxu0 %v124
    %314 = vmatprep.mubr.f32.mxu0 %v210
    %315 = vmatmul.mubr.f32.gmra.mxu0 %v248
    %v316 = vpop.f32.mrf.mxu0
    %v317 = vadd.f32 %v193, %v316
    %v318 = vpop.f32.mrf.mxu0
    %v319 = vadd.f32 %v197, %v318
    %320 = vdwg.mxu0
    %321 = vmatprep.subr.mxu0 %v123
    %322 = vmatpush1.msra.mxu0 %v122
    %323 = vmatprep.subr.mxu0 %v119
    %324 = vmatpush1.msra.mxu0 %v118
    %325 = vmatprep.subr.mxu0 %v115
    %326 = vmatpush1.msra.mxu0 %v114
    %327 = vmatprep.subr.mxu0 %v111
    %328 = vmatpush1.msra.mxu0 %v110
    %329 = vmatprep.subr.mxu0 %v107
    %330 = vmatpush1.msra.mxu0 %v106
    %331 = vmatprep.subr.mxu0 %v103
    %332 = vmatpush1.msra.mxu0 %v102
    %333 = vmatprep.subr.mxu0 %v99
    %334 = vmatpush1.msra.mxu0 %v98
    %335 = vmatprep.subr.mxu0 %v95
    %336 = vmatpush1.msra.mxu0 %v94
    %337 = vmatprep.subr.mxu0 %v91
    %338 = vmatpush1.msra.mxu0 %v90
    %339 = vmatprep.subr.mxu0 %v87
    %340 = vmatpush1.msra.mxu0 %v86
    %341 = vmatprep.subr.mxu0 %v83
    %342 = vmatpush1.msra.mxu0 %v82
    %343 = vmatprep.subr.mxu0 %v79
    %344 = vmatpush1.msra.mxu0 %v78
    %345 = vmatprep.subr.mxu0 %v75
    %346 = vmatpush1.msra.mxu0 %v74
    %347 = vmatprep.subr.mxu0 %v71
    %348 = vmatpush1.msra.mxu0 %v70
    %349 = vmatprep.subr.mxu0 %v67
    %350 = vmatpush1.msra.mxu0 %v66
    %351 = vmatprep.subr.mxu0 %v63
    %352 = vmatpush1.msra.mxu0 %v62
    %353 = vmatprep.subr.mxu0 %v187
    %354 = vmatpush2.msra.mxu0 %v186
    %355 = vmatprep.subr.mxu0 %v183
    %356 = vmatpush2.msra.mxu0 %v182
    %357 = vmatprep.subr.mxu0 %v179
    %358 = vmatpush2.msra.mxu0 %v178
    %359 = vmatprep.subr.mxu0 %v175
    %360 = vmatpush2.msra.mxu0 %v174
    %361 = vmatprep.subr.mxu0 %v171
    %362 = vmatpush2.msra.mxu0 %v170
    %363 = vmatprep.subr.mxu0 %v167
    %364 = vmatpush2.msra.mxu0 %v166
    %365 = vmatprep.subr.mxu0 %v163
    %366 = vmatpush2.msra.mxu0 %v162
    %367 = vmatprep.subr.mxu0 %v159
    %368 = vmatpush2.msra.mxu0 %v158
    %369 = vmatprep.subr.mxu0 %v155
    %370 = vmatpush2.msra.mxu0 %v154
    %371 = vmatprep.subr.mxu0 %v151
    %372 = vmatpush2.msra.mxu0 %v150
    %373 = vmatprep.subr.mxu0 %v147
    %374 = vmatpush2.msra.mxu0 %v146
    %375 = vmatprep.subr.mxu0 %v143
    %376 = vmatpush2.msra.mxu0 %v142
    %377 = vmatprep.subr.mxu0 %v139
    %378 = vmatpush2.msra.mxu0 %v138
    %379 = vmatprep.subr.mxu0 %v135
    %380 = vmatpush2.msra.mxu0 %v134
    %381 = vmatprep.subr.mxu0 %v131
    %382 = vmatpush2.msra.mxu0 %v130
    %383 = vmatprep.subr.mxu0 %v127
    %384 = vmatpush2.msra.mxu0 %v126
    %385 = vmatprep.mubr.f32.mxu0 %v210
    %386 = vmatmul.mubr.f32.gmra.mxu0 %v248
    %v387 = vpop.f32.mrf.mxu0
    %v388 = vadd.f32 %v201, %v387
    %v389 = vpop.f32.mrf.mxu0
    %v390 = vadd.f32 %v205, %v389
    %391 = vdwg.mxu0
    %v392 = vxor.u32 %v317, 2147483648
    %v393 = vmul.f32 %v392, 1.442695
    %v394 = vpow.pop %v393
    %v395 = vadd.f32 %v394, 1.0
    %v396 = vrcp.pop %v395
    %v397 = vmul.f32 1.0, %v396
    %v398 = vxor.u32 %v319, 2147483648
    %v399 = vmul.f32 %v398, 1.442695
    %v400 = vpow.pop %v399
    %v401 = vadd.f32 %v400, 1.0
    %v402 = vrcp.pop %v401
    %v403 = vmul.f32 1.0, %v402
    %v404 = vtanh.pop %v388
    %v405 = vxor.u32 %v390, 2147483648
    %v406 = vmul.f32 %v405, 1.442695
    %v407 = vpow.pop %v406
    %v408 = vadd.f32 %v407, 1.0
    %v409 = vrcp.pop %v408
    %v410 = vmul.f32 1.0, %v409
    %v411 = vmul.f32 %v403, %v211
    %v412 = vmul.f32 %v397, %v404
    %v413 = vadd.f32 %v411, %v412
    %v414 = vtanh.pop %v413
    %v415 = vmul.f32 %v410, %v414
    %v417 = vcombine.high %v415, %v415
    %v419 = vunpack.c.l.s4 1966171168
    %v420 = vunpack.c.0.s8 %v419
    %v421 = vlaneseq
    %v422 = vshrl.u32 %v421, 7
    %v423 = vsub.s32 %v420, %v422
    %v424 = vrot.slane %v415, %v423
    %v426 = vunpack.c.l.s4 1966171168
    %v427 = vunpack.c.0.s8 %v426
    %v428 = vlaneseq
    %v429 = vshrl.u32 %v428, 7
    %v430 = vsub.s32 %v427, %v429
    %v431 = vrot.slane %v417, %v430
    %v432 = vcombine.high %v424, %v424
    %v433 = vcombine.high %v431, %v431
    %v435 = vunpack.c.l.s4 1966171168
    %v436 = vunpack.c.0.s8 %v435
    %v437 = vlaneseq
    %v438 = vshrl.u32 %v437, 7
    %v439 = vsub.s32 %v436, %v438
    %v440 = vrot.slane %v424, %v439
    %v442 = vunpack.c.l.s4 1966171168
    %v443 = vunpack.c.0.s8 %v442
    %v444 = vlaneseq
    %v445 = vshrl.u32 %v444, 7
    %v446 = vsub.s32 %v443, %v445
    %v447 = vrot.slane %v431, %v446
    %v449 = vunpack.c.l.s4 1966171168
    %v450 = vunpack.c.0.s8 %v449
    %v451 = vlaneseq
    %v452 = vshrl.u32 %v451, 7
    %v453 = vsub.s32 %v450, %v452
    %v454 = vrot.slane %v432, %v453
    %v456 = vunpack.c.l.s4 1966171168
    %v457 = vunpack.c.0.s8 %v456
    %v458 = vlaneseq
    %v459 = vshrl.u32 %v458, 7
    %v460 = vsub.s32 %v457, %v459
    %v461 = vrot.slane %v433, %v460
    %v462 = vcombine.high %v440, %v440
    %v463 = vcombine.high %v447, %v447
    %v464 = vcombine.high %v454, %v454
    %v465 = vcombine.high %v461, %v461
    %474 = vst [vmem:[#allocation10] sm:$0x1] %v440
    %475 = vst [vmem:[#allocation10 + $0x8] sm:$0x1] %v454
    %476 = vst [vmem:[#allocation10 + $0x10] sm:$0x1] %v462
    %477 = vst [vmem:[#allocation10 + $0x18] sm:$0x1] %v464
    %478 = vst [vmem:[#allocation10 + $0x20] sm:$0x1] %v447
    %479 = vst [vmem:[#allocation10 + $0x28] sm:$0x1] %v461
    %480 = vst [vmem:[#allocation10 + $0x30] sm:$0x1] %v463
    %481 = vst [vmem:[#allocation10 + $0x38] sm:$0x1] %v465
    %v482 = vld [vmem:[#allocation4 + $0x1] sm:$0x1]
    %v483 = vld [vmem:[#allocation4 + $0x9] sm:$0x1]
    %v484 = vld [vmem:[#allocation4 + $0x11] sm:$0x1]
    %v485 = vld [vmem:[#allocation4 + $0x19] sm:$0x1]
    %v486 = vld [vmem:[#allocation4 + $0x21] sm:$0x1]
    %v487 = vld [vmem:[#allocation4 + $0x29] sm:$0x1]
    %v488 = vld [vmem:[#allocation4 + $0x31] sm:$0x1]
    %v489 = vld [vmem:[#allocation4 + $0x39] sm:$0x1]
    %v498 = vrot.slane %v483, 7
    %v499 = vsel %vm229, %v498, %v482
    %v500 = vrot.slane %v484, 6
    %v501 = vsel %vm232, %v500, %v499
    %v502 = vrot.slane %v485, 5
    %v503 = vsel %vm235, %v502, %v501
    %v504 = vrot.slane %v486, 4
    %v505 = vsel %vm238, %v504, %v503
    %v506 = vrot.slane %v487, 3
    %v507 = vsel %vm241, %v506, %v505
    %v508 = vrot.slane %v488, 2
    %v509 = vsel %vm244, %v508, %v507
    %v510 = vrot.slane %v489, 1
    %v511 = vsel %vm247, %v510, %v509
    %513 = vmatprep.subr.mxu0 %v121
    %514 = vmatpush1.msra.mxu0 %v120
    %515 = vmatprep.subr.mxu0 %v117
    %516 = vmatpush1.msra.mxu0 %v116
    %517 = vmatprep.subr.mxu0 %v113
    %518 = vmatpush1.msra.mxu0 %v112
    %519 = vmatprep.subr.mxu0 %v109
    %520 = vmatpush1.msra.mxu0 %v108
    %521 = vmatprep.subr.mxu0 %v105
    %522 = vmatpush1.msra.mxu0 %v104
    %523 = vmatprep.subr.mxu0 %v101
    %524 = vmatpush1.msra.mxu0 %v100
    %525 = vmatprep.subr.mxu0 %v97
    %526 = vmatpush1.msra.mxu0 %v96
    %527 = vmatprep.subr.mxu0 %v93
    %528 = vmatpush1.msra.mxu0 %v92
    %529 = vmatprep.subr.mxu0 %v89
    %530 = vmatpush1.msra.mxu0 %v88
    %531 = vmatprep.subr.mxu0 %v85
    %532 = vmatpush1.msra.mxu0 %v84
    %533 = vmatprep.subr.mxu0 %v81
    %534 = vmatpush1.msra.mxu0 %v80
    %535 = vmatprep.subr.mxu0 %v77
    %536 = vmatpush1.msra.mxu0 %v76
    %537 = vmatprep.subr.mxu0 %v73
    %538 = vmatpush1.msra.mxu0 %v72
    %539 = vmatprep.subr.mxu0 %v69
    %540 = vmatpush1.msra.mxu0 %v68
    %541 = vmatprep.subr.mxu0 %v65
    %542 = vmatpush1.msra.mxu0 %v64
    %543 = vmatprep.subr.mxu0 %v61
    %544 = vmatpush1.msra.mxu0 %v60
    %545 = vmatprep.subr.mxu0 %v185
    %546 = vmatpush2.msra.mxu0 %v184
    %547 = vmatprep.subr.mxu0 %v181
    %548 = vmatpush2.msra.mxu0 %v180
    %549 = vmatprep.subr.mxu0 %v177
    %550 = vmatpush2.msra.mxu0 %v176
    %551 = vmatprep.subr.mxu0 %v173
    %552 = vmatpush2.msra.mxu0 %v172
    %553 = vmatprep.subr.mxu0 %v169
    %554 = vmatpush2.msra.mxu0 %v168
    %555 = vmatprep.subr.mxu0 %v165
    %556 = vmatpush2.msra.mxu0 %v164
    %557 = vmatprep.subr.mxu0 %v161
    %558 = vmatpush2.msra.mxu0 %v160
    %559 = vmatprep.subr.mxu0 %v157
    %560 = vmatpush2.msra.mxu0 %v156
    %561 = vmatprep.subr.mxu0 %v153
    %562 = vmatpush2.msra.mxu0 %v152
    %563 = vmatprep.subr.mxu0 %v149
    %564 = vmatpush2.msra.mxu0 %v148
    %565 = vmatprep.subr.mxu0 %v145
    %566 = vmatpush2.msra.mxu0 %v144
    %567 = vmatprep.subr.mxu0 %v141
    %568 = vmatpush2.msra.mxu0 %v140
    %569 = vmatprep.subr.mxu0 %v137
    %570 = vmatpush2.msra.mxu0 %v136
    %571 = vmatprep.subr.mxu0 %v133
    %572 = vmatpush2.msra.mxu0 %v132
    %573 = vmatprep.subr.mxu0 %v129
    %574 = vmatpush2.msra.mxu0 %v128
    %575 = vmatprep.subr.mxu0 %v125
    %576 = vmatpush2.msra.mxu0 %v124
    %577 = vmatprep.mubr.f32.mxu0 %v415
    %578 = vmatmul.mubr.f32.gmra.mxu0 %v511
    %v579 = vpop.f32.mrf.mxu0
    %v580 = vadd.f32 %v193, %v579
    %v581 = vpop.f32.mrf.mxu0
    %v582 = vadd.f32 %v197, %v581
    %583 = vdwg.mxu0
    %584 = vmatprep.subr.mxu0 %v123
    %585 = vmatpush1.msra.mxu0 %v122
    %586 = vmatprep.subr.mxu0 %v119
    %587 = vmatpush1.msra.mxu0 %v118
    %588 = vmatprep.subr.mxu0 %v115
    %589 = vmatpush1.msra.mxu0 %v114
    %590 = vmatprep.subr.mxu0 %v111
    %591 = vmatpush1.msra.mxu0 %v110
    %592 = vmatprep.subr.mxu0 %v107
    %593 = vmatpush1.msra.mxu0 %v106
    %594 = vmatprep.subr.mxu0 %v103
    %595 = vmatpush1.msra.mxu0 %v102
    %596 = vmatprep.subr.mxu0 %v99
    %597 = vmatpush1.msra.mxu0 %v98
    %598 = vmatprep.subr.mxu0 %v95
    %599 = vmatpush1.msra.mxu0 %v94
    %600 = vmatprep.subr.mxu0 %v91
    %601 = vmatpush1.msra.mxu0 %v90
    %602 = vmatprep.subr.mxu0 %v87
    %603 = vmatpush1.msra.mxu0 %v86
    %604 = vmatprep.subr.mxu0 %v83
    %605 = vmatpush1.msra.mxu0 %v82
    %606 = vmatprep.subr.mxu0 %v79
    %607 = vmatpush1.msra.mxu0 %v78
    %608 = vmatprep.subr.mxu0 %v75
    %609 = vmatpush1.msra.mxu0 %v74
    %610 = vmatprep.subr.mxu0 %v71
    %611 = vmatpush1.msra.mxu0 %v70
    %612 = vmatprep.subr.mxu0 %v67
    %613 = vmatpush1.msra.mxu0 %v66
    %614 = vmatprep.subr.mxu0 %v63
    %615 = vmatpush1.msra.mxu0 %v62
    %616 = vmatprep.subr.mxu0 %v187
    %617 = vmatpush2.msra.mxu0 %v186
    %618 = vmatprep.subr.mxu0 %v183
    %619 = vmatpush2.msra.mxu0 %v182
    %620 = vmatprep.subr.mxu0 %v179
    %621 = vmatpush2.msra.mxu0 %v178
    %622 = vmatprep.subr.mxu0 %v175
    %623 = vmatpush2.msra.mxu0 %v174
    %624 = vmatprep.subr.mxu0 %v171
    %625 = vmatpush2.msra.mxu0 %v170
    %626 = vmatprep.subr.mxu0 %v167
    %627 = vmatpush2.msra.mxu0 %v166
    %628 = vmatprep.subr.mxu0 %v163
    %629 = vmatpush2.msra.mxu0 %v162
    %630 = vmatprep.subr.mxu0 %v159
    %631 = vmatpush2.msra.mxu0 %v158
    %632 = vmatprep.subr.mxu0 %v155
    %633 = vmatpush2.msra.mxu0 %v154
    %634 = vmatprep.subr.mxu0 %v151
    %635 = vmatpush2.msra.mxu0 %v150
    %636 = vmatprep.subr.mxu0 %v147
    %637 = vmatpush2.msra.mxu0 %v146
    %638 = vmatprep.subr.mxu0 %v143
    %639 = vmatpush2.msra.mxu0 %v142
    %640 = vmatprep.subr.mxu0 %v139
    %641 = vmatpush2.msra.mxu0 %v138
    %642 = vmatprep.subr.mxu0 %v135
    %643 = vmatpush2.msra.mxu0 %v134
    %644 = vmatprep.subr.mxu0 %v131
    %645 = vmatpush2.msra.mxu0 %v130
    %646 = vmatprep.subr.mxu0 %v127
    %647 = vmatpush2.msra.mxu0 %v126
    %648 = vmatprep.mubr.f32.mxu0 %v415
    %649 = vmatmul.mubr.f32.gmra.mxu0 %v511
    %v650 = vpop.f32.mrf.mxu0
    %v651 = vadd.f32 %v201, %v650
    %v652 = vpop.f32.mrf.mxu0
    %v653 = vadd.f32 %v205, %v652
    %654 = vdwg.mxu0
    %v655 = vxor.u32 %v580, 2147483648
    %v656 = vmul.f32 %v655, 1.442695
    %v657 = vpow.pop %v656
    %v658 = vadd.f32 %v657, 1.0
    %v659 = vrcp.pop %v658
    %v660 = vmul.f32 1.0, %v659
    %v661 = vxor.u32 %v582, 2147483648
    %v662 = vmul.f32 %v661, 1.442695
    %v663 = vpow.pop %v662
    %v664 = vadd.f32 %v663, 1.0
    %v665 = vrcp.pop %v664
    %v666 = vmul.f32 1.0, %v665
    %v667 = vtanh.pop %v651
    %v668 = vxor.u32 %v653, 2147483648
    %v669 = vmul.f32 %v668, 1.442695
    %v670 = vpow.pop %v669
    %v671 = vadd.f32 %v670, 1.0
    %v672 = vrcp.pop %v671
    %v673 = vmul.f32 1.0, %v672
    %v674 = vmul.f32 %v666, %v413
    %v675 = vmul.f32 %v660, %v667
    %v676 = vadd.f32 %v674, %v675
    %v677 = vtanh.pop %v676
    %v678 = vmul.f32 %v673, %v677
    %v680 = vcombine.high %v678, %v678
    %v682 = vunpack.c.l.s4 1966171168
    %v683 = vunpack.c.0.s8 %v682
    %v684 = vlaneseq
    %v685 = vshrl.u32 %v684, 7
    %v686 = vsub.s32 %v683, %v685
    %v687 = vrot.slane %v678, %v686
    %v689 = vunpack.c.l.s4 1966171168
    %v690 = vunpack.c.0.s8 %v689
    %v691 = vlaneseq
    %v692 = vshrl.u32 %v691, 7
    %v693 = vsub.s32 %v690, %v692
    %v694 = vrot.slane %v680, %v693
    %v695 = vcombine.high %v687, %v687
    %v696 = vcombine.high %v694, %v694
    %v698 = vunpack.c.l.s4 1966171168
    %v699 = vunpack.c.0.s8 %v698
    %v700 = vlaneseq
    %v701 = vshrl.u32 %v700, 7
    %v702 = vsub.s32 %v699, %v701
    %v703 = vrot.slane %v687, %v702
    %v705 = vunpack.c.l.s4 1966171168
    %v706 = vunpack.c.0.s8 %v705
    %v707 = vlaneseq
    %v708 = vshrl.u32 %v707, 7
    %v709 = vsub.s32 %v706, %v708
    %v710 = vrot.slane %v694, %v709
    %v712 = vunpack.c.l.s4 1966171168
    %v713 = vunpack.c.0.s8 %v712
    %v714 = vlaneseq
    %v715 = vshrl.u32 %v714, 7
    %v716 = vsub.s32 %v713, %v715
    %v717 = vrot.slane %v695, %v716
    %v719 = vunpack.c.l.s4 1966171168
    %v720 = vunpack.c.0.s8 %v719
    %v721 = vlaneseq
    %v722 = vshrl.u32 %v721, 7
    %v723 = vsub.s32 %v720, %v722
    %v724 = vrot.slane %v696, %v723
    %v725 = vcombine.high %v703, %v703
    %v726 = vcombine.high %v710, %v710
    %v727 = vcombine.high %v717, %v717
    %v728 = vcombine.high %v724, %v724
    %737 = vst [vmem:[#allocation10 + $0x1] sm:$0x1] %v703
    %738 = vst [vmem:[#allocation10 + $0x9] sm:$0x1] %v717
    %739 = vst [vmem:[#allocation10 + $0x11] sm:$0x1] %v725
    %740 = vst [vmem:[#allocation10 + $0x19] sm:$0x1] %v727
    %741 = vst [vmem:[#allocation10 + $0x21] sm:$0x1] %v710
    %742 = vst [vmem:[#allocation10 + $0x29] sm:$0x1] %v724
    %743 = vst [vmem:[#allocation10 + $0x31] sm:$0x1] %v726
    %744 = vst [vmem:[#allocation10 + $0x39] sm:$0x1] %v728
    %v745 = vld [vmem:[#allocation4 + $0x2] sm:$0x1]
    %v746 = vld [vmem:[#allocation4 + $0xa] sm:$0x1]
    %v747 = vld [vmem:[#allocation4 + $0x12] sm:$0x1]
    %v748 = vld [vmem:[#allocation4 + $0x1a] sm:$0x1]
    %v749 = vld [vmem:[#allocation4 + $0x22] sm:$0x1]
    %v750 = vld [vmem:[#allocation4 + $0x2a] sm:$0x1]
    %v751 = vld [vmem:[#allocation4 + $0x32] sm:$0x1]
    %v752 = vld [vmem:[#allocation4 + $0x3a] sm:$0x1]
    %v761 = vrot.slane %v746, 7
    %v762 = vsel %vm229, %v761, %v745
    %v763 = vrot.slane %v747, 6
    %v764 = vsel %vm232, %v763, %v762
    %v765 = vrot.slane %v748, 5
    %v766 = vsel %vm235, %v765, %v764
    %v767 = vrot.slane %v749, 4
    %v768 = vsel %vm238, %v767, %v766
    %v769 = vrot.slane %v750, 3
    %v770 = vsel %vm241, %v769, %v768
    %v771 = vrot.slane %v751, 2
    %v772 = vsel %vm244, %v771, %v770
    %v773 = vrot.slane %v752, 1
    %v774 = vsel %vm247, %v773, %v772
    %776 = vmatprep.subr.mxu0 %v121
    %777 = vmatpush1.msra.mxu0 %v120
    %778 = vmatprep.subr.mxu0 %v117
    %779 = vmatpush1.msra.mxu0 %v116
    %780 = vmatprep.subr.mxu0 %v113
    %781 = vmatpush1.msra.mxu0 %v112
    %782 = vmatprep.subr.mxu0 %v109
    %783 = vmatpush1.msra.mxu0 %v108
    %784 = vmatprep.subr.mxu0 %v105
    %785 = vmatpush1.msra.mxu0 %v104
    %786 = vmatprep.subr.mxu0 %v101
    %787 = vmatpush1.msra.mxu0 %v100
    %788 = vmatprep.subr.mxu0 %v97
    %789 = vmatpush1.msra.mxu0 %v96
    %790 = vmatprep.subr.mxu0 %v93
    %791 = vmatpush1.msra.mxu0 %v92
    %792 = vmatprep.subr.mxu0 %v89
    %793 = vmatpush1.msra.mxu0 %v88
    %794 = vmatprep.subr.mxu0 %v85
    %795 = vmatpush1.msra.mxu0 %v84
    %796 = vmatprep.subr.mxu0 %v81
    %797 = vmatpush1.msra.mxu0 %v80
    %798 = vmatprep.subr.mxu0 %v77
    %799 = vmatpush1.msra.mxu0 %v76
    %800 = vmatprep.subr.mxu0 %v73
    %801 = vmatpush1.msra.mxu0 %v72
    %802 = vmatprep.subr.mxu0 %v69
    %803 = vmatpush1.msra.mxu0 %v68
    %804 = vmatprep.subr.mxu0 %v65
    %805 = vmatpush1.msra.mxu0 %v64
    %806 = vmatprep.subr.mxu0 %v61
    %807 = vmatpush1.msra.mxu0 %v60
    %808 = vmatprep.subr.mxu0 %v185
    %809 = vmatpush2.msra.mxu0 %v184
    %810 = vmatprep.subr.mxu0 %v181
    %811 = vmatpush2.msra.mxu0 %v180
    %812 = vmatprep.subr.mxu0 %v177
    %813 = vmatpush2.msra.mxu0 %v176
    %814 = vmatprep.subr.mxu0 %v173
    %815 = vmatpush2.msra.mxu0 %v172
    %816 = vmatprep.subr.mxu0 %v169
    %817 = vmatpush2.msra.mxu0 %v168
    %818 = vmatprep.subr.mxu0 %v165
    %819 = vmatpush2.msra.mxu0 %v164
    %820 = vmatprep.subr.mxu0 %v161
    %821 = vmatpush2.msra.mxu0 %v160
    %822 = vmatprep.subr.mxu0 %v157
    %823 = vmatpush2.msra.mxu0 %v156
    %824 = vmatprep.subr.mxu0 %v153
    %825 = vmatpush2.msra.mxu0 %v152
    %826 = vmatprep.subr.mxu0 %v149
    %827 = vmatpush2.msra.mxu0 %v148
    %828 = vmatprep.subr.mxu0 %v145
    %829 = vmatpush2.msra.mxu0 %v144
    %830 = vmatprep.subr.mxu0 %v141
    %831 = vmatpush2.msra.mxu0 %v140
    %832 = vmatprep.subr.mxu0 %v137
    %833 = vmatpush2.msra.mxu0 %v136
    %834 = vmatprep.subr.mxu0 %v133
    %835 = vmatpush2.msra.mxu0 %v132
    %836 = vmatprep.subr.mxu0 %v129
    %837 = vmatpush2.msra.mxu0 %v128
    %838 = vmatprep.subr.mxu0 %v125
    %839 = vmatpush2.msra.mxu0 %v124
    %840 = vmatprep.mubr.f32.mxu0 %v678
    %841 = vmatmul.mubr.f32.gmra.mxu0 %v774
    %v842 = vpop.f32.mrf.mxu0
    %v843 = vadd.f32 %v193, %v842
    %v844 = vpop.f32.mrf.mxu0
    %v845 = vadd.f32 %v197, %v844
    %846 = vdwg.mxu0
    %847 = vmatprep.subr.mxu0 %v123
    %848 = vmatpush1.msra.mxu0 %v122
    %849 = vmatprep.subr.mxu0 %v119
    %850 = vmatpush1.msra.mxu0 %v118
    %851 = vmatprep.subr.mxu0 %v115
    %852 = vmatpush1.msra.mxu0 %v114
    %853 = vmatprep.subr.mxu0 %v111
    %854 = vmatpush1.msra.mxu0 %v110
    %855 = vmatprep.subr.mxu0 %v107
    %856 = vmatpush1.msra.mxu0 %v106
    %857 = vmatprep.subr.mxu0 %v103
    %858 = vmatpush1.msra.mxu0 %v102
    %859 = vmatprep.subr.mxu0 %v99
    %860 = vmatpush1.msra.mxu0 %v98
    %861 = vmatprep.subr.mxu0 %v95
    %862 = vmatpush1.msra.mxu0 %v94
    %863 = vmatprep.subr.mxu0 %v91
    %864 = vmatpush1.msra.mxu0 %v90
    %865 = vmatprep.subr.mxu0 %v87
    %866 = vmatpush1.msra.mxu0 %v86
    %867 = vmatprep.subr.mxu0 %v83
    %868 = vmatpush1.msra.mxu0 %v82
    %869 = vmatprep.subr.mxu0 %v79
    %870 = vmatpush1.msra.mxu0 %v78
    %871 = vmatprep.subr.mxu0 %v75
    %872 = vmatpush1.msra.mxu0 %v74
    %873 = vmatprep.subr.mxu0 %v71
    %874 = vmatpush1.msra.mxu0 %v70
    %875 = vmatprep.subr.mxu0 %v67
    %876 = vmatpush1.msra.mxu0 %v66
    %877 = vmatprep.subr.mxu0 %v63
    %878 = vmatpush1.msra.mxu0 %v62
    %879 = vmatprep.subr.mxu0 %v187
    %880 = vmatpush2.msra.mxu0 %v186
    %881 = vmatprep.subr.mxu0 %v183
    %882 = vmatpush2.msra.mxu0 %v182
    %883 = vmatprep.subr.mxu0 %v179
    %884 = vmatpush2.msra.mxu0 %v178
    %885 = vmatprep.subr.mxu0 %v175
    %886 = vmatpush2.msra.mxu0 %v174
    %887 = vmatprep.subr.mxu0 %v171
    %888 = vmatpush2.msra.mxu0 %v170
    %889 = vmatprep.subr.mxu0 %v167
    %890 = vmatpush2.msra.mxu0 %v166
    %891 = vmatprep.subr.mxu0 %v163
    %892 = vmatpush2.msra.mxu0 %v162
    %893 = vmatprep.subr.mxu0 %v159
    %894 = vmatpush2.msra.mxu0 %v158
    %895 = vmatprep.subr.mxu0 %v155
    %896 = vmatpush2.msra.mxu0 %v154
    %897 = vmatprep.subr.mxu0 %v151
    %898 = vmatpush2.msra.mxu0 %v150
    %899 = vmatprep.subr.mxu0 %v147
    %900 = vmatpush2.msra.mxu0 %v146
    %901 = vmatprep.subr.mxu0 %v143
    %902 = vmatpush2.msra.mxu0 %v142
    %903 = vmatprep.subr.mxu0 %v139
    %904 = vmatpush2.msra.mxu0 %v138
    %905 = vmatprep.subr.mxu0 %v135
    %906 = vmatpush2.msra.mxu0 %v134
    %907 = vmatprep.subr.mxu0 %v131
    %908 = vmatpush2.msra.mxu0 %v130
    %909 = vmatprep.subr.mxu0 %v127
    %910 = vmatpush2.msra.mxu0 %v126
    %911 = vmatprep.mubr.f32.mxu0 %v678
    %912 = vmatmul.mubr.f32.gmra.mxu0 %v774
    %v913 = vpop.f32.mrf.mxu0
    %v914 = vadd.f32 %v201, %v913
    %v915 = vpop.f32.mrf.mxu0
    %v916 = vadd.f32 %v205, %v915
    %917 = vdwg.mxu0
    %v918 = vxor.u32 %v843, 2147483648
    %v919 = vmul.f32 %v918, 1.442695
    %v920 = vpow.pop %v919
    %v921 = vadd.f32 %v920, 1.0
    %v922 = vrcp.pop %v921
    %v923 = vmul.f32 1.0, %v922
    %v924 = vxor.u32 %v845, 2147483648
    %v925 = vmul.f32 %v924, 1.442695
    %v926 = vpow.pop %v925
    %v927 = vadd.f32 %v926, 1.0
    %v928 = vrcp.pop %v927
    %v929 = vmul.f32 1.0, %v928
    %v930 = vtanh.pop %v914
    %v931 = vxor.u32 %v916, 2147483648
    %v932 = vmul.f32 %v931, 1.442695
    %v933 = vpow.pop %v932
    %v934 = vadd.f32 %v933, 1.0
    %v935 = vrcp.pop %v934
    %v936 = vmul.f32 1.0, %v935
    %v937 = vmul.f32 %v929, %v676
    %v938 = vmul.f32 %v923, %v930
    %v939 = vadd.f32 %v937, %v938
    %v940 = vtanh.pop %v939
    %v941 = vmul.f32 %v936, %v940
    %v943 = vcombine.high %v941, %v941
    %v945 = vunpack.c.l.s4 1966171168
    %v946 = vunpack.c.0.s8 %v945
    %v947 = vlaneseq
    %v948 = vshrl.u32 %v947, 7
    %v949 = vsub.s32 %v946, %v948
    %v950 = vrot.slane %v941, %v949
    %v952 = vunpack.c.l.s4 1966171168
    %v953 = vunpack.c.0.s8 %v952
    %v954 = vlaneseq
    %v955 = vshrl.u32 %v954, 7
    %v956 = vsub.s32 %v953, %v955
    %v957 = vrot.slane %v943, %v956
    %v958 = vcombine.high %v950, %v950
    %v959 = vcombine.high %v957, %v957
    %v961 = vunpack.c.l.s4 1966171168
    %v962 = vunpack.c.0.s8 %v961
    %v963 = vlaneseq
    %v964 = vshrl.u32 %v963, 7
    %v965 = vsub.s32 %v962, %v964
    %v966 = vrot.slane %v950, %v965
    %v968 = vunpack.c.l.s4 1966171168
    %v969 = vunpack.c.0.s8 %v968
    %v970 = vlaneseq
    %v971 = vshrl.u32 %v970, 7
    %v972 = vsub.s32 %v969, %v971
    %v973 = vrot.slane %v957, %v972
    %v975 = vunpack.c.l.s4 1966171168
    %v976 = vunpack.c.0.s8 %v975
    %v977 = vlaneseq
    %v978 = vshrl.u32 %v977, 7
    %v979 = vsub.s32 %v976, %v978
    %v980 = vrot.slane %v958, %v979
    %v982 = vunpack.c.l.s4 1966171168
    %v983 = vunpack.c.0.s8 %v982
    %v984 = vlaneseq
    %v985 = vshrl.u32 %v984, 7
    %v986 = vsub.s32 %v983, %v985
    %v987 = vrot.slane %v959, %v986
    %v988 = vcombine.high %v966, %v966
    %v989 = vcombine.high %v973, %v973
    %v990 = vcombine.high %v980, %v980
    %v991 = vcombine.high %v987, %v987
    %1000 = vst [vmem:[#allocation10 + $0x2] sm:$0x1] %v966
    %1001 = vst [vmem:[#allocation10 + $0xa] sm:$0x1] %v980
    %1002 = vst [vmem:[#allocation10 + $0x12] sm:$0x1] %v988
    %1003 = vst [vmem:[#allocation10 + $0x1a] sm:$0x1] %v990
    %1004 = vst [vmem:[#allocation10 + $0x22] sm:$0x1] %v973
    %1005 = vst [vmem:[#allocation10 + $0x2a] sm:$0x1] %v987
    %1006 = vst [vmem:[#allocation10 + $0x32] sm:$0x1] %v989
    %1007 = vst [vmem:[#allocation10 + $0x3a] sm:$0x1] %v991
    %v1008 = vld [vmem:[#allocation4 + $0x3] sm:$0x1]
    %v1009 = vld [vmem:[#allocation4 + $0xb] sm:$0x1]
    %v1010 = vld [vmem:[#allocation4 + $0x13] sm:$0x1]
    %v1011 = vld [vmem:[#allocation4 + $0x1b] sm:$0x1]
    %v1012 = vld [vmem:[#allocation4 + $0x23] sm:$0x1]
    %v1013 = vld [vmem:[#allocation4 + $0x2b] sm:$0x1]
    %v1014 = vld [vmem:[#allocation4 + $0x33] sm:$0x1]
    %v1015 = vld [vmem:[#allocation4 + $0x3b] sm:$0x1]
    %v1024 = vrot.slane %v1009, 7
    %v1025 = vsel %vm229, %v1024, %v1008
    %v1026 = vrot.slane %v1010, 6
    %v1027 = vsel %vm232, %v1026, %v1025
    %v1028 = vrot.slane %v1011, 5
    %v1029 = vsel %vm235, %v1028, %v1027
    %v1030 = vrot.slane %v1012, 4
    %v1031 = vsel %vm238, %v1030, %v1029
    %v1032 = vrot.slane %v1013, 3
    %v1033 = vsel %vm241, %v1032, %v1031
    %v1034 = vrot.slane %v1014, 2
    %v1035 = vsel %vm244, %v1034, %v1033
    %v1036 = vrot.slane %v1015, 1
    %v1037 = vsel %vm247, %v1036, %v1035
    %1039 = vmatprep.subr.mxu0 %v121
    %1040 = vmatpush1.msra.mxu0 %v120
    %1041 = vmatprep.subr.mxu0 %v117
    %1042 = vmatpush1.msra.mxu0 %v116
    %1043 = vmatprep.subr.mxu0 %v113
    %1044 = vmatpush1.msra.mxu0 %v112
    %1045 = vmatprep.subr.mxu0 %v109
    %1046 = vmatpush1.msra.mxu0 %v108
    %1047 = vmatprep.subr.mxu0 %v105
    %1048 = vmatpush1.msra.mxu0 %v104
    %1049 = vmatprep.subr.mxu0 %v101
    %1050 = vmatpush1.msra.mxu0 %v100
    %1051 = vmatprep.subr.mxu0 %v97
    %1052 = vmatpush1.msra.mxu0 %v96
    %1053 = vmatprep.subr.mxu0 %v93
    %1054 = vmatpush1.msra.mxu0 %v92
    %1055 = vmatprep.subr.mxu0 %v89
    %1056 = vmatpush1.msra.mxu0 %v88
    %1057 = vmatprep.subr.mxu0 %v85
    %1058 = vmatpush1.msra.mxu0 %v84
    %1059 = vmatprep.subr.mxu0 %v81
    %1060 = vmatpush1.msra.mxu0 %v80
    %1061 = vmatprep.subr.mxu0 %v77
    %1062 = vmatpush1.msra.mxu0 %v76
    %1063 = vmatprep.subr.mxu0 %v73
    %1064 = vmatpush1.msra.mxu0 %v72
    %1065 = vmatprep.subr.mxu0 %v69
    %1066 = vmatpush1.msra.mxu0 %v68
    %1067 = vmatprep.subr.mxu0 %v65
    %1068 = vmatpush1.msra.mxu0 %v64
    %1069 = vmatprep.subr.mxu0 %v61
    %1070 = vmatpush1.msra.mxu0 %v60
    %1071 = vmatprep.subr.mxu0 %v185
    %1072 = vmatpush2.msra.mxu0 %v184
    %1073 = vmatprep.subr.mxu0 %v181
    %1074 = vmatpush2.msra.mxu0 %v180
    %1075 = vmatprep.subr.mxu0 %v177
    %1076 = vmatpush2.msra.mxu0 %v176
    %1077 = vmatprep.subr.mxu0 %v173
    %1078 = vmatpush2.msra.mxu0 %v172
    %1079 = vmatprep.subr.mxu0 %v169
    %1080 = vmatpush2.msra.mxu0 %v168
    %1081 = vmatprep.subr.mxu0 %v165
    %1082 = vmatpush2.msra.mxu0 %v164
    %1083 = vmatprep.subr.mxu0 %v161
    %1084 = vmatpush2.msra.mxu0 %v160
    %1085 = vmatprep.subr.mxu0 %v157
    %1086 = vmatpush2.msra.mxu0 %v156
    %1087 = vmatprep.subr.mxu0 %v153
    %1088 = vmatpush2.msra.mxu0 %v152
    %1089 = vmatprep.subr.mxu0 %v149
    %1090 = vmatpush2.msra.mxu0 %v148
    %1091 = vmatprep.subr.mxu0 %v145
    %1092 = vmatpush2.msra.mxu0 %v144
    %1093 = vmatprep.subr.mxu0 %v141
    %1094 = vmatpush2.msra.mxu0 %v140
    %1095 = vmatprep.subr.mxu0 %v137
    %1096 = vmatpush2.msra.mxu0 %v136
    %1097 = vmatprep.subr.mxu0 %v133
    %1098 = vmatpush2.msra.mxu0 %v132
    %1099 = vmatprep.subr.mxu0 %v129
    %1100 = vmatpush2.msra.mxu0 %v128
    %1101 = vmatprep.subr.mxu0 %v125
    %1102 = vmatpush2.msra.mxu0 %v124
    %1103 = vmatprep.mubr.f32.mxu0 %v941
    %1104 = vmatmul.mubr.f32.gmra.mxu0 %v1037
    %v1105 = vpop.f32.mrf.mxu0
    %v1106 = vadd.f32 %v193, %v1105
    %v1107 = vpop.f32.mrf.mxu0
    %v1108 = vadd.f32 %v197, %v1107
    %1109 = vdwg.mxu0
    %1110 = vmatprep.subr.mxu0 %v123
    %1111 = vmatpush1.msra.mxu0 %v122
    %1112 = vmatprep.subr.mxu0 %v119
    %1113 = vmatpush1.msra.mxu0 %v118
    %1114 = vmatprep.subr.mxu0 %v115
    %1115 = vmatpush1.msra.mxu0 %v114
    %1116 = vmatprep.subr.mxu0 %v111
    %1117 = vmatpush1.msra.mxu0 %v110
    %1118 = vmatprep.subr.mxu0 %v107
    %1119 = vmatpush1.msra.mxu0 %v106
    %1120 = vmatprep.subr.mxu0 %v103
    %1121 = vmatpush1.msra.mxu0 %v102
    %1122 = vmatprep.subr.mxu0 %v99
    %1123 = vmatpush1.msra.mxu0 %v98
    %1124 = vmatprep.subr.mxu0 %v95
    %1125 = vmatpush1.msra.mxu0 %v94
    %1126 = vmatprep.subr.mxu0 %v91
    %1127 = vmatpush1.msra.mxu0 %v90
    %1128 = vmatprep.subr.mxu0 %v87
    %1129 = vmatpush1.msra.mxu0 %v86
    %1130 = vmatprep.subr.mxu0 %v83
    %1131 = vmatpush1.msra.mxu0 %v82
    %1132 = vmatprep.subr.mxu0 %v79
    %1133 = vmatpush1.msra.mxu0 %v78
    %1134 = vmatprep.subr.mxu0 %v75
    %1135 = vmatpush1.msra.mxu0 %v74
    %1136 = vmatprep.subr.mxu0 %v71
    %1137 = vmatpush1.msra.mxu0 %v70
    %1138 = vmatprep.subr.mxu0 %v67
    %1139 = vmatpush1.msra.mxu0 %v66
    %1140 = vmatprep.subr.mxu0 %v63
    %1141 = vmatpush1.msra.mxu0 %v62
    %1142 = vmatprep.subr.mxu0 %v187
    %1143 = vmatpush2.msra.mxu0 %v186
    %1144 = vmatprep.subr.mxu0 %v183
    %1145 = vmatpush2.msra.mxu0 %v182
    %1146 = vmatprep.subr.mxu0 %v179
    %1147 = vmatpush2.msra.mxu0 %v178
    %1148 = vmatprep.subr.mxu0 %v175
    %1149 = vmatpush2.msra.mxu0 %v174
    %1150 = vmatprep.subr.mxu0 %v171
    %1151 = vmatpush2.msra.mxu0 %v170
    %1152 = vmatprep.subr.mxu0 %v167
    %1153 = vmatpush2.msra.mxu0 %v166
    %1154 = vmatprep.subr.mxu0 %v163
    %1155 = vmatpush2.msra.mxu0 %v162
    %1156 = vmatprep.subr.mxu0 %v159
    %1157 = vmatpush2.msra.mxu0 %v158
    %1158 = vmatprep.subr.mxu0 %v155
    %1159 = vmatpush2.msra.mxu0 %v154
    %1160 = vmatprep.subr.mxu0 %v151
    %1161 = vmatpush2.msra.mxu0 %v150
    %1162 = vmatprep.subr.mxu0 %v147
    %1163 = vmatpush2.msra.mxu0 %v146
    %1164 = vmatprep.subr.mxu0 %v143
    %1165 = vmatpush2.msra.mxu0 %v142
    %1166 = vmatprep.subr.mxu0 %v139
    %1167 = vmatpush2.msra.mxu0 %v138
    %1168 = vmatprep.subr.mxu0 %v135
    %1169 = vmatpush2.msra.mxu0 %v134
    %1170 = vmatprep.subr.mxu0 %v131
    %1171 = vmatpush2.msra.mxu0 %v130
    %1172 = vmatprep.subr.mxu0 %v127
    %1173 = vmatpush2.msra.mxu0 %v126
    %1174 = vmatprep.mubr.f32.mxu0 %v941
    %1175 = vmatmul.mubr.f32.gmra.mxu0 %v1037
    %v1176 = vpop.f32.mrf.mxu0
    %v1177 = vadd.f32 %v201, %v1176
    %v1178 = vpop.f32.mrf.mxu0
    %v1179 = vadd.f32 %v205, %v1178
    %1180 = vdwg.mxu0
    %v1181 = vxor.u32 %v1106, 2147483648
    %v1182 = vmul.f32 %v1181, 1.442695
    %v1183 = vpow.pop %v1182
    %v1184 = vadd.f32 %v1183, 1.0
    %v1185 = vrcp.pop %v1184
    %v1186 = vmul.f32 1.0, %v1185
    %v1187 = vxor.u32 %v1108, 2147483648
    %v1188 = vmul.f32 %v1187, 1.442695
    %v1189 = vpow.pop %v1188
    %v1190 = vadd.f32 %v1189, 1.0
    %v1191 = vrcp.pop %v1190
    %v1192 = vmul.f32 1.0, %v1191
    %v1193 = vtanh.pop %v1177
    %v1194 = vxor.u32 %v1179, 2147483648
    %v1195 = vmul.f32 %v1194, 1.442695
    %v1196 = vpow.pop %v1195
    %v1197 = vadd.f32 %v1196, 1.0
    %v1198 = vrcp.pop %v1197
    %v1199 = vmul.f32 1.0, %v1198
    %v1200 = vmul.f32 %v1192, %v939
    %v1201 = vmul.f32 %v1186, %v1193
    %v1202 = vadd.f32 %v1200, %v1201
    %v1203 = vtanh.pop %v1202
    %v1204 = vmul.f32 %v1199, %v1203
    %v1206 = vcombine.high %v1204, %v1204
    %v1208 = vunpack.c.l.s4 1966171168
    %v1209 = vunpack.c.0.s8 %v1208
    %v1210 = vlaneseq
    %v1211 = vshrl.u32 %v1210, 7
    %v1212 = vsub.s32 %v1209, %v1211
    %v1213 = vrot.slane %v1204, %v1212
    %v1215 = vunpack.c.l.s4 1966171168
    %v1216 = vunpack.c.0.s8 %v1215
    %v1217 = vlaneseq
    %v1218 = vshrl.u32 %v1217, 7
    %v1219 = vsub.s32 %v1216, %v1218
    %v1220 = vrot.slane %v1206, %v1219
    %v1221 = vcombine.high %v1213, %v1213
    %v1222 = vcombine.high %v1220, %v1220
    %v1224 = vunpack.c.l.s4 1966171168
    %v1225 = vunpack.c.0.s8 %v1224
    %v1226 = vlaneseq
    %v1227 = vshrl.u32 %v1226, 7
    %v1228 = vsub.s32 %v1225, %v1227
    %v1229 = vrot.slane %v1213, %v1228
    %v1231 = vunpack.c.l.s4 1966171168
    %v1232 = vunpack.c.0.s8 %v1231
    %v1233 = vlaneseq
    %v1234 = vshrl.u32 %v1233, 7
    %v1235 = vsub.s32 %v1232, %v1234
    %v1236 = vrot.slane %v1220, %v1235
    %v1238 = vunpack.c.l.s4 1966171168
    %v1239 = vunpack.c.0.s8 %v1238
    %v1240 = vlaneseq
    %v1241 = vshrl.u32 %v1240, 7
    %v1242 = vsub.s32 %v1239, %v1241
    %v1243 = vrot.slane %v1221, %v1242
    %v1245 = vunpack.c.l.s4 1966171168
    %v1246 = vunpack.c.0.s8 %v1245
    %v1247 = vlaneseq
    %v1248 = vshrl.u32 %v1247, 7
    %v1249 = vsub.s32 %v1246, %v1248
    %v1250 = vrot.slane %v1222, %v1249
    %v1251 = vcombine.high %v1229, %v1229
    %v1252 = vcombine.high %v1236, %v1236
    %v1253 = vcombine.high %v1243, %v1243
    %v1254 = vcombine.high %v1250, %v1250
    %1263 = vst [vmem:[#allocation10 + $0x3] sm:$0x1] %v1229
    %1264 = vst [vmem:[#allocation10 + $0xb] sm:$0x1] %v1243
    %1265 = vst [vmem:[#allocation10 + $0x13] sm:$0x1] %v1251
    %1266 = vst [vmem:[#allocation10 + $0x1b] sm:$0x1] %v1253
    %1267 = vst [vmem:[#allocation10 + $0x23] sm:$0x1] %v1236
    %1268 = vst [vmem:[#allocation10 + $0x2b] sm:$0x1] %v1250
    %1269 = vst [vmem:[#allocation10 + $0x33] sm:$0x1] %v1252
    %1270 = vst [vmem:[#allocation10 + $0x3b] sm:$0x1] %v1254
    %v1271 = vld [vmem:[#allocation4 + $0x4] sm:$0x1]
    %v1272 = vld [vmem:[#allocation4 + $0xc] sm:$0x1]
    %v1273 = vld [vmem:[#allocation4 + $0x14] sm:$0x1]
    %v1274 = vld [vmem:[#allocation4 + $0x1c] sm:$0x1]
    %v1275 = vld [vmem:[#allocation4 + $0x24] sm:$0x1]
    %v1276 = vld [vmem:[#allocation4 + $0x2c] sm:$0x1]
    %v1277 = vld [vmem:[#allocation4 + $0x34] sm:$0x1]
    %v1278 = vld [vmem:[#allocation4 + $0x3c] sm:$0x1]
    %v1287 = vrot.slane %v1272, 7
    %v1288 = vsel %vm229, %v1287, %v1271
    %v1289 = vrot.slane %v1273, 6
    %v1290 = vsel %vm232, %v1289, %v1288
    %v1291 = vrot.slane %v1274, 5
    %v1292 = vsel %vm235, %v1291, %v1290
    %v1293 = vrot.slane %v1275, 4
    %v1294 = vsel %vm238, %v1293, %v1292
    %v1295 = vrot.slane %v1276, 3
    %v1296 = vsel %vm241, %v1295, %v1294
    %v1297 = vrot.slane %v1277, 2
    %v1298 = vsel %vm244, %v1297, %v1296
    %v1299 = vrot.slane %v1278, 1
    %v1300 = vsel %vm247, %v1299, %v1298
    %1302 = vmatprep.subr.mxu0 %v121
    %1303 = vmatpush1.msra.mxu0 %v120
    %1304 = vmatprep.subr.mxu0 %v117
    %1305 = vmatpush1.msra.mxu0 %v116
    %1306 = vmatprep.subr.mxu0 %v113
    %1307 = vmatpush1.msra.mxu0 %v112
    %1308 = vmatprep.subr.mxu0 %v109
    %1309 = vmatpush1.msra.mxu0 %v108
    %1310 = vmatprep.subr.mxu0 %v105
    %1311 = vmatpush1.msra.mxu0 %v104
    %1312 = vmatprep.subr.mxu0 %v101
    %1313 = vmatpush1.msra.mxu0 %v100
    %1314 = vmatprep.subr.mxu0 %v97
    %1315 = vmatpush1.msra.mxu0 %v96
    %1316 = vmatprep.subr.mxu0 %v93
    %1317 = vmatpush1.msra.mxu0 %v92
    %1318 = vmatprep.subr.mxu0 %v89
    %1319 = vmatpush1.msra.mxu0 %v88
    %1320 = vmatprep.subr.mxu0 %v85
    %1321 = vmatpush1.msra.mxu0 %v84
    %1322 = vmatprep.subr.mxu0 %v81
    %1323 = vmatpush1.msra.mxu0 %v80
    %1324 = vmatprep.subr.mxu0 %v77
    %1325 = vmatpush1.msra.mxu0 %v76
    %1326 = vmatprep.subr.mxu0 %v73
    %1327 = vmatpush1.msra.mxu0 %v72
    %1328 = vmatprep.subr.mxu0 %v69
    %1329 = vmatpush1.msra.mxu0 %v68
    %1330 = vmatprep.subr.mxu0 %v65
    %1331 = vmatpush1.msra.mxu0 %v64
    %1332 = vmatprep.subr.mxu0 %v61
    %1333 = vmatpush1.msra.mxu0 %v60
    %1334 = vmatprep.subr.mxu0 %v185
    %1335 = vmatpush2.msra.mxu0 %v184
    %1336 = vmatprep.subr.mxu0 %v181
    %1337 = vmatpush2.msra.mxu0 %v180
    %1338 = vmatprep.subr.mxu0 %v177
    %1339 = vmatpush2.msra.mxu0 %v176
    %1340 = vmatprep.subr.mxu0 %v173
    %1341 = vmatpush2.msra.mxu0 %v172
    %1342 = vmatprep.subr.mxu0 %v169
    %1343 = vmatpush2.msra.mxu0 %v168
    %1344 = vmatprep.subr.mxu0 %v165
    %1345 = vmatpush2.msra.mxu0 %v164
    %1346 = vmatprep.subr.mxu0 %v161
    %1347 = vmatpush2.msra.mxu0 %v160
    %1348 = vmatprep.subr.mxu0 %v157
    %1349 = vmatpush2.msra.mxu0 %v156
    %1350 = vmatprep.subr.mxu0 %v153
    %1351 = vmatpush2.msra.mxu0 %v152
    %1352 = vmatprep.subr.mxu0 %v149
    %1353 = vmatpush2.msra.mxu0 %v148
    %1354 = vmatprep.subr.mxu0 %v145
    %1355 = vmatpush2.msra.mxu0 %v144
    %1356 = vmatprep.subr.mxu0 %v141
    %1357 = vmatpush2.msra.mxu0 %v140
    %1358 = vmatprep.subr.mxu0 %v137
    %1359 = vmatpush2.msra.mxu0 %v136
    %1360 = vmatprep.subr.mxu0 %v133
    %1361 = vmatpush2.msra.mxu0 %v132
    %1362 = vmatprep.subr.mxu0 %v129
    %1363 = vmatpush2.msra.mxu0 %v128
    %1364 = vmatprep.subr.mxu0 %v125
    %1365 = vmatpush2.msra.mxu0 %v124
    %1366 = vmatprep.mubr.f32.mxu0 %v1204
    %1367 = vmatmul.mubr.f32.gmra.mxu0 %v1300
    %v1368 = vpop.f32.mrf.mxu0
    %v1369 = vadd.f32 %v193, %v1368
    %v1370 = vpop.f32.mrf.mxu0
    %v1371 = vadd.f32 %v197, %v1370
    %1372 = vdwg.mxu0
    %1373 = vmatprep.subr.mxu0 %v123
    %1374 = vmatpush1.msra.mxu0 %v122
    %1375 = vmatprep.subr.mxu0 %v119
    %1376 = vmatpush1.msra.mxu0 %v118
    %1377 = vmatprep.subr.mxu0 %v115
    %1378 = vmatpush1.msra.mxu0 %v114
    %1379 = vmatprep.subr.mxu0 %v111
    %1380 = vmatpush1.msra.mxu0 %v110
    %1381 = vmatprep.subr.mxu0 %v107
    %1382 = vmatpush1.msra.mxu0 %v106
    %1383 = vmatprep.subr.mxu0 %v103
    %1384 = vmatpush1.msra.mxu0 %v102
    %1385 = vmatprep.subr.mxu0 %v99
    %1386 = vmatpush1.msra.mxu0 %v98
    %1387 = vmatprep.subr.mxu0 %v95
    %1388 = vmatpush1.msra.mxu0 %v94
    %1389 = vmatprep.subr.mxu0 %v91
    %1390 = vmatpush1.msra.mxu0 %v90
    %1391 = vmatprep.subr.mxu0 %v87
    %1392 = vmatpush1.msra.mxu0 %v86
    %1393 = vmatprep.subr.mxu0 %v83
    %1394 = vmatpush1.msra.mxu0 %v82
    %1395 = vmatprep.subr.mxu0 %v79
    %1396 = vmatpush1.msra.mxu0 %v78
    %1397 = vmatprep.subr.mxu0 %v75
    %1398 = vmatpush1.msra.mxu0 %v74
    %1399 = vmatprep.subr.mxu0 %v71
    %1400 = vmatpush1.msra.mxu0 %v70
    %1401 = vmatprep.subr.mxu0 %v67
    %1402 = vmatpush1.msra.mxu0 %v66
    %1403 = vmatprep.subr.mxu0 %v63
    %1404 = vmatpush1.msra.mxu0 %v62
    %1405 = vmatprep.subr.mxu0 %v187
    %1406 = vmatpush2.msra.mxu0 %v186
    %1407 = vmatprep.subr.mxu0 %v183
    %1408 = vmatpush2.msra.mxu0 %v182
    %1409 = vmatprep.subr.mxu0 %v179
    %1410 = vmatpush2.msra.mxu0 %v178
    %1411 = vmatprep.subr.mxu0 %v175
    %1412 = vmatpush2.msra.mxu0 %v174
    %1413 = vmatprep.subr.mxu0 %v171
    %1414 = vmatpush2.msra.mxu0 %v170
    %1415 = vmatprep.subr.mxu0 %v167
    %1416 = vmatpush2.msra.mxu0 %v166
    %1417 = vmatprep.subr.mxu0 %v163
    %1418 = vmatpush2.msra.mxu0 %v162
    %1419 = vmatprep.subr.mxu0 %v159
    %1420 = vmatpush2.msra.mxu0 %v158
    %1421 = vmatprep.subr.mxu0 %v155
    %1422 = vmatpush2.msra.mxu0 %v154
    %1423 = vmatprep.subr.mxu0 %v151
    %1424 = vmatpush2.msra.mxu0 %v150
    %1425 = vmatprep.subr.mxu0 %v147
    %1426 = vmatpush2.msra.mxu0 %v146
    %1427 = vmatprep.subr.mxu0 %v143
    %1428 = vmatpush2.msra.mxu0 %v142
    %1429 = vmatprep.subr.mxu0 %v139
    %1430 = vmatpush2.msra.mxu0 %v138
    %1431 = vmatprep.subr.mxu0 %v135
    %1432 = vmatpush2.msra.mxu0 %v134
    %1433 = vmatprep.subr.mxu0 %v131
    %1434 = vmatpush2.msra.mxu0 %v130
    %1435 = vmatprep.subr.mxu0 %v127
    %1436 = vmatpush2.msra.mxu0 %v126
    %1437 = vmatprep.mubr.f32.mxu0 %v1204
    %1438 = vmatmul.mubr.f32.gmra.mxu0 %v1300
    %v1439 = vpop.f32.mrf.mxu0
    %v1440 = vadd.f32 %v201, %v1439
    %v1441 = vpop.f32.mrf.mxu0
    %v1442 = vadd.f32 %v205, %v1441
    %1443 = vdwg.mxu0
    %v1444 = vxor.u32 %v1369, 2147483648
    %v1445 = vmul.f32 %v1444, 1.442695
    %v1446 = vpow.pop %v1445
    %v1447 = vadd.f32 %v1446, 1.0
    %v1448 = vrcp.pop %v1447
    %v1449 = vmul.f32 1.0, %v1448
    %v1450 = vxor.u32 %v1371, 2147483648
    %v1451 = vmul.f32 %v1450, 1.442695
    %v1452 = vpow.pop %v1451
    %v1453 = vadd.f32 %v1452, 1.0
    %v1454 = vrcp.pop %v1453
    %v1455 = vmul.f32 1.0, %v1454
    %v1456 = vtanh.pop %v1440
    %v1457 = vxor.u32 %v1442, 2147483648
    %v1458 = vmul.f32 %v1457, 1.442695
    %v1459 = vpow.pop %v1458
    %v1460 = vadd.f32 %v1459, 1.0
    %v1461 = vrcp.pop %v1460
    %v1462 = vmul.f32 1.0, %v1461
    %v1463 = vmul.f32 %v1455, %v1202
    %v1464 = vmul.f32 %v1449, %v1456
    %v1465 = vadd.f32 %v1463, %v1464
    %v1466 = vtanh.pop %v1465
    %v1467 = vmul.f32 %v1462, %v1466
    %v1469 = vcombine.high %v1467, %v1467
    %v1471 = vunpack.c.l.s4 1966171168
    %v1472 = vunpack.c.0.s8 %v1471
    %v1473 = vlaneseq
    %v1474 = vshrl.u32 %v1473, 7
    %v1475 = vsub.s32 %v1472, %v1474
    %v1476 = vrot.slane %v1467, %v1475
    %v1478 = vunpack.c.l.s4 1966171168
    %v1479 = vunpack.c.0.s8 %v1478
    %v1480 = vlaneseq
    %v1481 = vshrl.u32 %v1480, 7
    %v1482 = vsub.s32 %v1479, %v1481
    %v1483 = vrot.slane %v1469, %v1482
    %v1484 = vcombine.high %v1476, %v1476
    %v1485 = vcombine.high %v1483, %v1483
    %v1487 = vunpack.c.l.s4 1966171168
    %v1488 = vunpack.c.0.s8 %v1487
    %v1489 = vlaneseq
    %v1490 = vshrl.u32 %v1489, 7
    %v1491 = vsub.s32 %v1488, %v1490
    %v1492 = vrot.slane %v1476, %v1491
    %v1494 = vunpack.c.l.s4 1966171168
    %v1495 = vunpack.c.0.s8 %v1494
    %v1496 = vlaneseq
    %v1497 = vshrl.u32 %v1496, 7
    %v1498 = vsub.s32 %v1495, %v1497
    %v1499 = vrot.slane %v1483, %v1498
    %v1501 = vunpack.c.l.s4 1966171168
    %v1502 = vunpack.c.0.s8 %v1501
    %v1503 = vlaneseq
    %v1504 = vshrl.u32 %v1503, 7
    %v1505 = vsub.s32 %v1502, %v1504
    %v1506 = vrot.slane %v1484, %v1505
    %v1508 = vunpack.c.l.s4 1966171168
    %v1509 = vunpack.c.0.s8 %v1508
    %v1510 = vlaneseq
    %v1511 = vshrl.u32 %v1510, 7
    %v1512 = vsub.s32 %v1509, %v1511
    %v1513 = vrot.slane %v1485, %v1512
    %v1514 = vcombine.high %v1492, %v1492
    %v1515 = vcombine.high %v1499, %v1499
    %v1516 = vcombine.high %v1506, %v1506
    %v1517 = vcombine.high %v1513, %v1513
    %1526 = vst [vmem:[#allocation10 + $0x4] sm:$0x1] %v1492
    %1527 = vst [vmem:[#allocation10 + $0xc] sm:$0x1] %v1506
    %1528 = vst [vmem:[#allocation10 + $0x14] sm:$0x1] %v1514
    %1529 = vst [vmem:[#allocation10 + $0x1c] sm:$0x1] %v1516
    %1530 = vst [vmem:[#allocation10 + $0x24] sm:$0x1] %v1499
    %1531 = vst [vmem:[#allocation10 + $0x2c] sm:$0x1] %v1513
    %1532 = vst [vmem:[#allocation10 + $0x34] sm:$0x1] %v1515
    %1533 = vst [vmem:[#allocation10 + $0x3c] sm:$0x1] %v1517
    %v1534 = vld [vmem:[#allocation4 + $0x5] sm:$0x1]
    %v1535 = vld [vmem:[#allocation4 + $0xd] sm:$0x1]
    %v1536 = vld [vmem:[#allocation4 + $0x15] sm:$0x1]
    %v1537 = vld [vmem:[#allocation4 + $0x1d] sm:$0x1]
    %v1538 = vld [vmem:[#allocation4 + $0x25] sm:$0x1]
    %v1539 = vld [vmem:[#allocation4 + $0x2d] sm:$0x1]
    %v1540 = vld [vmem:[#allocation4 + $0x35] sm:$0x1]
    %v1541 = vld [vmem:[#allocation4 + $0x3d] sm:$0x1]
    %v1550 = vrot.slane %v1535, 7
    %v1551 = vsel %vm229, %v1550, %v1534
    %v1552 = vrot.slane %v1536, 6
    %v1553 = vsel %vm232, %v1552, %v1551
    %v1554 = vrot.slane %v1537, 5
    %v1555 = vsel %vm235, %v1554, %v1553
    %v1556 = vrot.slane %v1538, 4
    %v1557 = vsel %vm238, %v1556, %v1555
    %v1558 = vrot.slane %v1539, 3
    %v1559 = vsel %vm241, %v1558, %v1557
    %v1560 = vrot.slane %v1540, 2
    %v1561 = vsel %vm244, %v1560, %v1559
    %v1562 = vrot.slane %v1541, 1
    %v1563 = vsel %vm247, %v1562, %v1561
    %1565 = vmatprep.subr.mxu0 %v121
    %1566 = vmatpush1.msra.mxu0 %v120
    %1567 = vmatprep.subr.mxu0 %v117
    %1568 = vmatpush1.msra.mxu0 %v116
    %1569 = vmatprep.subr.mxu0 %v113
    %1570 = vmatpush1.msra.mxu0 %v112
    %1571 = vmatprep.subr.mxu0 %v109
    %1572 = vmatpush1.msra.mxu0 %v108
    %1573 = vmatprep.subr.mxu0 %v105
    %1574 = vmatpush1.msra.mxu0 %v104
    %1575 = vmatprep.subr.mxu0 %v101
    %1576 = vmatpush1.msra.mxu0 %v100
    %1577 = vmatprep.subr.mxu0 %v97
    %1578 = vmatpush1.msra.mxu0 %v96
    %1579 = vmatprep.subr.mxu0 %v93
    %1580 = vmatpush1.msra.mxu0 %v92
    %1581 = vmatprep.subr.mxu0 %v89
    %1582 = vmatpush1.msra.mxu0 %v88
    %1583 = vmatprep.subr.mxu0 %v85
    %1584 = vmatpush1.msra.mxu0 %v84
    %1585 = vmatprep.subr.mxu0 %v81
    %1586 = vmatpush1.msra.mxu0 %v80
    %1587 = vmatprep.subr.mxu0 %v77
    %1588 = vmatpush1.msra.mxu0 %v76
    %1589 = vmatprep.subr.mxu0 %v73
    %1590 = vmatpush1.msra.mxu0 %v72
    %1591 = vmatprep.subr.mxu0 %v69
    %1592 = vmatpush1.msra.mxu0 %v68
    %1593 = vmatprep.subr.mxu0 %v65
    %1594 = vmatpush1.msra.mxu0 %v64
    %1595 = vmatprep.subr.mxu0 %v61
    %1596 = vmatpush1.msra.mxu0 %v60
    %1597 = vmatprep.subr.mxu0 %v185
    %1598 = vmatpush2.msra.mxu0 %v184
    %1599 = vmatprep.subr.mxu0 %v181
    %1600 = vmatpush2.msra.mxu0 %v180
    %1601 = vmatprep.subr.mxu0 %v177
    %1602 = vmatpush2.msra.mxu0 %v176
    %1603 = vmatprep.subr.mxu0 %v173
    %1604 = vmatpush2.msra.mxu0 %v172
    %1605 = vmatprep.subr.mxu0 %v169
    %1606 = vmatpush2.msra.mxu0 %v168
    %1607 = vmatprep.subr.mxu0 %v165
    %1608 = vmatpush2.msra.mxu0 %v164
    %1609 = vmatprep.subr.mxu0 %v161
    %1610 = vmatpush2.msra.mxu0 %v160
    %1611 = vmatprep.subr.mxu0 %v157
    %1612 = vmatpush2.msra.mxu0 %v156
    %1613 = vmatprep.subr.mxu0 %v153
    %1614 = vmatpush2.msra.mxu0 %v152
    %1615 = vmatprep.subr.mxu0 %v149
    %1616 = vmatpush2.msra.mxu0 %v148
    %1617 = vmatprep.subr.mxu0 %v145
    %1618 = vmatpush2.msra.mxu0 %v144
    %1619 = vmatprep.subr.mxu0 %v141
    %1620 = vmatpush2.msra.mxu0 %v140
    %1621 = vmatprep.subr.mxu0 %v137
    %1622 = vmatpush2.msra.mxu0 %v136
    %1623 = vmatprep.subr.mxu0 %v133
    %1624 = vmatpush2.msra.mxu0 %v132
    %1625 = vmatprep.subr.mxu0 %v129
    %1626 = vmatpush2.msra.mxu0 %v128
    %1627 = vmatprep.subr.mxu0 %v125
    %1628 = vmatpush2.msra.mxu0 %v124
    %1629 = vmatprep.mubr.f32.mxu0 %v1467
    %1630 = vmatmul.mubr.f32.gmra.mxu0 %v1563
    %v1631 = vpop.f32.mrf.mxu0
    %v1632 = vadd.f32 %v193, %v1631
    %v1633 = vpop.f32.mrf.mxu0
    %v1634 = vadd.f32 %v197, %v1633
    %1635 = vdwg.mxu0
    %1636 = vmatprep.subr.mxu0 %v123
    %1637 = vmatpush1.msra.mxu0 %v122
    %1638 = vmatprep.subr.mxu0 %v119
    %1639 = vmatpush1.msra.mxu0 %v118
    %1640 = vmatprep.subr.mxu0 %v115
    %1641 = vmatpush1.msra.mxu0 %v114
    %1642 = vmatprep.subr.mxu0 %v111
    %1643 = vmatpush1.msra.mxu0 %v110
    %1644 = vmatprep.subr.mxu0 %v107
    %1645 = vmatpush1.msra.mxu0 %v106
    %1646 = vmatprep.subr.mxu0 %v103
    %1647 = vmatpush1.msra.mxu0 %v102
    %1648 = vmatprep.subr.mxu0 %v99
    %1649 = vmatpush1.msra.mxu0 %v98
    %1650 = vmatprep.subr.mxu0 %v95
    %1651 = vmatpush1.msra.mxu0 %v94
    %1652 = vmatprep.subr.mxu0 %v91
    %1653 = vmatpush1.msra.mxu0 %v90
    %1654 = vmatprep.subr.mxu0 %v87
    %1655 = vmatpush1.msra.mxu0 %v86
    %1656 = vmatprep.subr.mxu0 %v83
    %1657 = vmatpush1.msra.mxu0 %v82
    %1658 = vmatprep.subr.mxu0 %v79
    %1659 = vmatpush1.msra.mxu0 %v78
    %1660 = vmatprep.subr.mxu0 %v75
    %1661 = vmatpush1.msra.mxu0 %v74
    %1662 = vmatprep.subr.mxu0 %v71
    %1663 = vmatpush1.msra.mxu0 %v70
    %1664 = vmatprep.subr.mxu0 %v67
    %1665 = vmatpush1.msra.mxu0 %v66
    %1666 = vmatprep.subr.mxu0 %v63
    %1667 = vmatpush1.msra.mxu0 %v62
    %1668 = vmatprep.subr.mxu0 %v187
    %1669 = vmatpush2.msra.mxu0 %v186
    %1670 = vmatprep.subr.mxu0 %v183
    %1671 = vmatpush2.msra.mxu0 %v182
    %1672 = vmatprep.subr.mxu0 %v179
    %1673 = vmatpush2.msra.mxu0 %v178
    %1674 = vmatprep.subr.mxu0 %v175
    %1675 = vmatpush2.msra.mxu0 %v174
    %1676 = vmatprep.subr.mxu0 %v171
    %1677 = vmatpush2.msra.mxu0 %v170
    %1678 = vmatprep.subr.mxu0 %v167
    %1679 = vmatpush2.msra.mxu0 %v166
    %1680 = vmatprep.subr.mxu0 %v163
    %1681 = vmatpush2.msra.mxu0 %v162
    %1682 = vmatprep.subr.mxu0 %v159
    %1683 = vmatpush2.msra.mxu0 %v158
    %1684 = vmatprep.subr.mxu0 %v155
    %1685 = vmatpush2.msra.mxu0 %v154
    %1686 = vmatprep.subr.mxu0 %v151
    %1687 = vmatpush2.msra.mxu0 %v150
    %1688 = vmatprep.subr.mxu0 %v147
    %1689 = vmatpush2.msra.mxu0 %v146
    %1690 = vmatprep.subr.mxu0 %v143
    %1691 = vmatpush2.msra.mxu0 %v142
    %1692 = vmatprep.subr.mxu0 %v139
    %1693 = vmatpush2.msra.mxu0 %v138
    %1694 = vmatprep.subr.mxu0 %v135
    %1695 = vmatpush2.msra.mxu0 %v134
    %1696 = vmatprep.subr.mxu0 %v131
    %1697 = vmatpush2.msra.mxu0 %v130
    %1698 = vmatprep.subr.mxu0 %v127
    %1699 = vmatpush2.msra.mxu0 %v126
    %1700 = vmatprep.mubr.f32.mxu0 %v1467
    %1701 = vmatmul.mubr.f32.gmra.mxu0 %v1563
    %v1702 = vpop.f32.mrf.mxu0
    %v1703 = vadd.f32 %v201, %v1702
    %v1704 = vpop.f32.mrf.mxu0
    %v1705 = vadd.f32 %v205, %v1704
    %1706 = vdwg.mxu0
    %v1707 = vxor.u32 %v1632, 2147483648
    %v1708 = vmul.f32 %v1707, 1.442695
    %v1709 = vpow.pop %v1708
    %v1710 = vadd.f32 %v1709, 1.0
    %v1711 = vrcp.pop %v1710
    %v1712 = vmul.f32 1.0, %v1711
    %v1713 = vxor.u32 %v1634, 2147483648
    %v1714 = vmul.f32 %v1713, 1.442695
    %v1715 = vpow.pop %v1714
    %v1716 = vadd.f32 %v1715, 1.0
    %v1717 = vrcp.pop %v1716
    %v1718 = vmul.f32 1.0, %v1717
    %v1719 = vtanh.pop %v1703
    %v1720 = vxor.u32 %v1705, 2147483648
    %v1721 = vmul.f32 %v1720, 1.442695
    %v1722 = vpow.pop %v1721
    %v1723 = vadd.f32 %v1722, 1.0
    %v1724 = vrcp.pop %v1723
    %v1725 = vmul.f32 1.0, %v1724
    %v1726 = vmul.f32 %v1718, %v1465
    %v1727 = vmul.f32 %v1712, %v1719
    %v1728 = vadd.f32 %v1726, %v1727
    %v1729 = vtanh.pop %v1728
    %v1730 = vmul.f32 %v1725, %v1729
    %v1732 = vcombine.high %v1730, %v1730
    %v1734 = vunpack.c.l.s4 1966171168
    %v1735 = vunpack.c.0.s8 %v1734
    %v1736 = vlaneseq
    %v1737 = vshrl.u32 %v1736, 7
    %v1738 = vsub.s32 %v1735, %v1737
    %v1739 = vrot.slane %v1730, %v1738
    %v1741 = vunpack.c.l.s4 1966171168
    %v1742 = vunpack.c.0.s8 %v1741
    %v1743 = vlaneseq
    %v1744 = vshrl.u32 %v1743, 7
    %v1745 = vsub.s32 %v1742, %v1744
    %v1746 = vrot.slane %v1732, %v1745
    %v1747 = vcombine.high %v1739, %v1739
    %v1748 = vcombine.high %v1746, %v1746
    %v1750 = vunpack.c.l.s4 1966171168
    %v1751 = vunpack.c.0.s8 %v1750
    %v1752 = vlaneseq
    %v1753 = vshrl.u32 %v1752, 7
    %v1754 = vsub.s32 %v1751, %v1753
    %v1755 = vrot.slane %v1739, %v1754
    %v1757 = vunpack.c.l.s4 1966171168
    %v1758 = vunpack.c.0.s8 %v1757
    %v1759 = vlaneseq
    %v1760 = vshrl.u32 %v1759, 7
    %v1761 = vsub.s32 %v1758, %v1760
    %v1762 = vrot.slane %v1746, %v1761
    %v1764 = vunpack.c.l.s4 1966171168
    %v1765 = vunpack.c.0.s8 %v1764
    %v1766 = vlaneseq
    %v1767 = vshrl.u32 %v1766, 7
    %v1768 = vsub.s32 %v1765, %v1767
    %v1769 = vrot.slane %v1747, %v1768
    %v1771 = vunpack.c.l.s4 1966171168
    %v1772 = vunpack.c.0.s8 %v1771
    %v1773 = vlaneseq
    %v1774 = vshrl.u32 %v1773, 7
    %v1775 = vsub.s32 %v1772, %v1774
    %v1776 = vrot.slane %v1748, %v1775
    %v1777 = vcombine.high %v1755, %v1755
    %v1778 = vcombine.high %v1762, %v1762
    %v1779 = vcombine.high %v1769, %v1769
    %v1780 = vcombine.high %v1776, %v1776
    %1789 = vst [vmem:[#allocation10 + $0x5] sm:$0x1] %v1755
    %1790 = vst [vmem:[#allocation10 + $0xd] sm:$0x1] %v1769
    %1791 = vst [vmem:[#allocation10 + $0x15] sm:$0x1] %v1777
    %1792 = vst [vmem:[#allocation10 + $0x1d] sm:$0x1] %v1779
    %1793 = vst [vmem:[#allocation10 + $0x25] sm:$0x1] %v1762
    %1794 = vst [vmem:[#allocation10 + $0x2d] sm:$0x1] %v1776
    %1795 = vst [vmem:[#allocation10 + $0x35] sm:$0x1] %v1778
    %1796 = vst [vmem:[#allocation10 + $0x3d] sm:$0x1] %v1780
    %v1797 = vld [vmem:[#allocation4 + $0x6] sm:$0x1]
    %v1798 = vld [vmem:[#allocation4 + $0xe] sm:$0x1]
    %v1799 = vld [vmem:[#allocation4 + $0x16] sm:$0x1]
    %v1800 = vld [vmem:[#allocation4 + $0x1e] sm:$0x1]
    %v1801 = vld [vmem:[#allocation4 + $0x26] sm:$0x1]
    %v1802 = vld [vmem:[#allocation4 + $0x2e] sm:$0x1]
    %v1803 = vld [vmem:[#allocation4 + $0x36] sm:$0x1]
    %v1804 = vld [vmem:[#allocation4 + $0x3e] sm:$0x1]
    %v1813 = vrot.slane %v1798, 7
    %v1814 = vsel %vm229, %v1813, %v1797
    %v1815 = vrot.slane %v1799, 6
    %v1816 = vsel %vm232, %v1815, %v1814
    %v1817 = vrot.slane %v1800, 5
    %v1818 = vsel %vm235, %v1817, %v1816
    %v1819 = vrot.slane %v1801, 4
    %v1820 = vsel %vm238, %v1819, %v1818
    %v1821 = vrot.slane %v1802, 3
    %v1822 = vsel %vm241, %v1821, %v1820
    %v1823 = vrot.slane %v1803, 2
    %v1824 = vsel %vm244, %v1823, %v1822
    %v1825 = vrot.slane %v1804, 1
    %v1826 = vsel %vm247, %v1825, %v1824
    %1828 = vmatprep.subr.mxu0 %v121
    %1829 = vmatpush1.msra.mxu0 %v120
    %1830 = vmatprep.subr.mxu0 %v117
    %1831 = vmatpush1.msra.mxu0 %v116
    %1832 = vmatprep.subr.mxu0 %v113
    %1833 = vmatpush1.msra.mxu0 %v112
    %1834 = vmatprep.subr.mxu0 %v109
    %1835 = vmatpush1.msra.mxu0 %v108
    %1836 = vmatprep.subr.mxu0 %v105
    %1837 = vmatpush1.msra.mxu0 %v104
    %1838 = vmatprep.subr.mxu0 %v101
    %1839 = vmatpush1.msra.mxu0 %v100
    %1840 = vmatprep.subr.mxu0 %v97
    %1841 = vmatpush1.msra.mxu0 %v96
    %1842 = vmatprep.subr.mxu0 %v93
    %1843 = vmatpush1.msra.mxu0 %v92
    %1844 = vmatprep.subr.mxu0 %v89
    %1845 = vmatpush1.msra.mxu0 %v88
    %1846 = vmatprep.subr.mxu0 %v85
    %1847 = vmatpush1.msra.mxu0 %v84
    %1848 = vmatprep.subr.mxu0 %v81
    %1849 = vmatpush1.msra.mxu0 %v80
    %1850 = vmatprep.subr.mxu0 %v77
    %1851 = vmatpush1.msra.mxu0 %v76
    %1852 = vmatprep.subr.mxu0 %v73
    %1853 = vmatpush1.msra.mxu0 %v72
    %1854 = vmatprep.subr.mxu0 %v69
    %1855 = vmatpush1.msra.mxu0 %v68
    %1856 = vmatprep.subr.mxu0 %v65
    %1857 = vmatpush1.msra.mxu0 %v64
    %1858 = vmatprep.subr.mxu0 %v61
    %1859 = vmatpush1.msra.mxu0 %v60
    %1860 = vmatprep.subr.mxu0 %v185
    %1861 = vmatpush2.msra.mxu0 %v184
    %1862 = vmatprep.subr.mxu0 %v181
    %1863 = vmatpush2.msra.mxu0 %v180
    %1864 = vmatprep.subr.mxu0 %v177
    %1865 = vmatpush2.msra.mxu0 %v176
    %1866 = vmatprep.subr.mxu0 %v173
    %1867 = vmatpush2.msra.mxu0 %v172
    %1868 = vmatprep.subr.mxu0 %v169
    %1869 = vmatpush2.msra.mxu0 %v168
    %1870 = vmatprep.subr.mxu0 %v165
    %1871 = vmatpush2.msra.mxu0 %v164
    %1872 = vmatprep.subr.mxu0 %v161
    %1873 = vmatpush2.msra.mxu0 %v160
    %1874 = vmatprep.subr.mxu0 %v157
    %1875 = vmatpush2.msra.mxu0 %v156
    %1876 = vmatprep.subr.mxu0 %v153
    %1877 = vmatpush2.msra.mxu0 %v152
    %1878 = vmatprep.subr.mxu0 %v149
    %1879 = vmatpush2.msra.mxu0 %v148
    %1880 = vmatprep.subr.mxu0 %v145
    %1881 = vmatpush2.msra.mxu0 %v144
    %1882 = vmatprep.subr.mxu0 %v141
    %1883 = vmatpush2.msra.mxu0 %v140
    %1884 = vmatprep.subr.mxu0 %v137
    %1885 = vmatpush2.msra.mxu0 %v136
    %1886 = vmatprep.subr.mxu0 %v133
    %1887 = vmatpush2.msra.mxu0 %v132
    %1888 = vmatprep.subr.mxu0 %v129
    %1889 = vmatpush2.msra.mxu0 %v128
    %1890 = vmatprep.subr.mxu0 %v125
    %1891 = vmatpush2.msra.mxu0 %v124
    %1892 = vmatprep.mubr.f32.mxu0 %v1730
    %1893 = vmatmul.mubr.f32.gmra.mxu0 %v1826
    %v1894 = vpop.f32.mrf.mxu0
    %v1895 = vadd.f32 %v193, %v1894
    %v1896 = vpop.f32.mrf.mxu0
    %v1897 = vadd.f32 %v197, %v1896
    %1898 = vdwg.mxu0
    %1899 = vmatprep.subr.mxu0 %v123
    %1900 = vmatpush1.msra.mxu0 %v122
    %1901 = vmatprep.subr.mxu0 %v119
    %1902 = vmatpush1.msra.mxu0 %v118
    %1903 = vmatprep.subr.mxu0 %v115
    %1904 = vmatpush1.msra.mxu0 %v114
    %1905 = vmatprep.subr.mxu0 %v111
    %1906 = vmatpush1.msra.mxu0 %v110
    %1907 = vmatprep.subr.mxu0 %v107
    %1908 = vmatpush1.msra.mxu0 %v106
    %1909 = vmatprep.subr.mxu0 %v103
    %1910 = vmatpush1.msra.mxu0 %v102
    %1911 = vmatprep.subr.mxu0 %v99
    %1912 = vmatpush1.msra.mxu0 %v98
    %1913 = vmatprep.subr.mxu0 %v95
    %1914 = vmatpush1.msra.mxu0 %v94
    %1915 = vmatprep.subr.mxu0 %v91
    %1916 = vmatpush1.msra.mxu0 %v90
    %1917 = vmatprep.subr.mxu0 %v87
    %1918 = vmatpush1.msra.mxu0 %v86
    %1919 = vmatprep.subr.mxu0 %v83
    %1920 = vmatpush1.msra.mxu0 %v82
    %1921 = vmatprep.subr.mxu0 %v79
    %1922 = vmatpush1.msra.mxu0 %v78
    %1923 = vmatprep.subr.mxu0 %v75
    %1924 = vmatpush1.msra.mxu0 %v74
    %1925 = vmatprep.subr.mxu0 %v71
    %1926 = vmatpush1.msra.mxu0 %v70
    %1927 = vmatprep.subr.mxu0 %v67
    %1928 = vmatpush1.msra.mxu0 %v66
    %1929 = vmatprep.subr.mxu0 %v63
    %1930 = vmatpush1.msra.mxu0 %v62
    %1931 = vmatprep.subr.mxu0 %v187
    %1932 = vmatpush2.msra.mxu0 %v186
    %1933 = vmatprep.subr.mxu0 %v183
    %1934 = vmatpush2.msra.mxu0 %v182
    %1935 = vmatprep.subr.mxu0 %v179
    %1936 = vmatpush2.msra.mxu0 %v178
    %1937 = vmatprep.subr.mxu0 %v175
    %1938 = vmatpush2.msra.mxu0 %v174
    %1939 = vmatprep.subr.mxu0 %v171
    %1940 = vmatpush2.msra.mxu0 %v170
    %1941 = vmatprep.subr.mxu0 %v167
    %1942 = vmatpush2.msra.mxu0 %v166
    %1943 = vmatprep.subr.mxu0 %v163
    %1944 = vmatpush2.msra.mxu0 %v162
    %1945 = vmatprep.subr.mxu0 %v159
    %1946 = vmatpush2.msra.mxu0 %v158
    %1947 = vmatprep.subr.mxu0 %v155
    %1948 = vmatpush2.msra.mxu0 %v154
    %1949 = vmatprep.subr.mxu0 %v151
    %1950 = vmatpush2.msra.mxu0 %v150
    %1951 = vmatprep.subr.mxu0 %v147
    %1952 = vmatpush2.msra.mxu0 %v146
    %1953 = vmatprep.subr.mxu0 %v143
    %1954 = vmatpush2.msra.mxu0 %v142
    %1955 = vmatprep.subr.mxu0 %v139
    %1956 = vmatpush2.msra.mxu0 %v138
    %1957 = vmatprep.subr.mxu0 %v135
    %1958 = vmatpush2.msra.mxu0 %v134
    %1959 = vmatprep.subr.mxu0 %v131
    %1960 = vmatpush2.msra.mxu0 %v130
    %1961 = vmatprep.subr.mxu0 %v127
    %1962 = vmatpush2.msra.mxu0 %v126
    %1963 = vmatprep.mubr.f32.mxu0 %v1730
    %1964 = vmatmul.mubr.f32.gmra.mxu0 %v1826
    %v1965 = vpop.f32.mrf.mxu0
    %v1966 = vadd.f32 %v201, %v1965
    %v1967 = vpop.f32.mrf.mxu0
    %v1968 = vadd.f32 %v205, %v1967
    %1969 = vdwg.mxu0
    %v1970 = vxor.u32 %v1895, 2147483648
    %v1971 = vmul.f32 %v1970, 1.442695
    %v1972 = vpow.pop %v1971
    %v1973 = vadd.f32 %v1972, 1.0
    %v1974 = vrcp.pop %v1973
    %v1975 = vmul.f32 1.0, %v1974
    %v1976 = vxor.u32 %v1897, 2147483648
    %v1977 = vmul.f32 %v1976, 1.442695
    %v1978 = vpow.pop %v1977
    %v1979 = vadd.f32 %v1978, 1.0
    %v1980 = vrcp.pop %v1979
    %v1981 = vmul.f32 1.0, %v1980
    %v1982 = vtanh.pop %v1966
    %v1983 = vxor.u32 %v1968, 2147483648
    %v1984 = vmul.f32 %v1983, 1.442695
    %v1985 = vpow.pop %v1984
    %v1986 = vadd.f32 %v1985, 1.0
    %v1987 = vrcp.pop %v1986
    %v1988 = vmul.f32 1.0, %v1987
    %v1989 = vmul.f32 %v1981, %v1728
    %v1990 = vmul.f32 %v1975, %v1982
    %v1991 = vadd.f32 %v1989, %v1990
    %v1992 = vtanh.pop %v1991
    %v1993 = vmul.f32 %v1988, %v1992
    %v1995 = vcombine.high %v1993, %v1993
    %v1997 = vunpack.c.l.s4 1966171168
    %v1998 = vunpack.c.0.s8 %v1997
    %v1999 = vlaneseq
    %v2000 = vshrl.u32 %v1999, 7
    %v2001 = vsub.s32 %v1998, %v2000
    %v2002 = vrot.slane %v1993, %v2001
    %v2004 = vunpack.c.l.s4 1966171168
    %v2005 = vunpack.c.0.s8 %v2004
    %v2006 = vlaneseq
    %v2007 = vshrl.u32 %v2006, 7
    %v2008 = vsub.s32 %v2005, %v2007
    %v2009 = vrot.slane %v1995, %v2008
    %v2010 = vcombine.high %v2002, %v2002
    %v2011 = vcombine.high %v2009, %v2009
    %v2013 = vunpack.c.l.s4 1966171168
    %v2014 = vunpack.c.0.s8 %v2013
    %v2015 = vlaneseq
    %v2016 = vshrl.u32 %v2015, 7
    %v2017 = vsub.s32 %v2014, %v2016
    %v2018 = vrot.slane %v2002, %v2017
    %v2020 = vunpack.c.l.s4 1966171168
    %v2021 = vunpack.c.0.s8 %v2020
    %v2022 = vlaneseq
    %v2023 = vshrl.u32 %v2022, 7
    %v2024 = vsub.s32 %v2021, %v2023
    %v2025 = vrot.slane %v2009, %v2024
    %v2027 = vunpack.c.l.s4 1966171168
    %v2028 = vunpack.c.0.s8 %v2027
    %v2029 = vlaneseq
    %v2030 = vshrl.u32 %v2029, 7
    %v2031 = vsub.s32 %v2028, %v2030
    %v2032 = vrot.slane %v2010, %v2031
    %v2034 = vunpack.c.l.s4 1966171168
    %v2035 = vunpack.c.0.s8 %v2034
    %v2036 = vlaneseq
    %v2037 = vshrl.u32 %v2036, 7
    %v2038 = vsub.s32 %v2035, %v2037
    %v2039 = vrot.slane %v2011, %v2038
    %v2040 = vcombine.high %v2018, %v2018
    %v2041 = vcombine.high %v2025, %v2025
    %v2042 = vcombine.high %v2032, %v2032
    %v2043 = vcombine.high %v2039, %v2039
    %2052 = vst [vmem:[#allocation10 + $0x6] sm:$0x1] %v2018
    %2053 = vst [vmem:[#allocation10 + $0xe] sm:$0x1] %v2032
    %2054 = vst [vmem:[#allocation10 + $0x16] sm:$0x1] %v2040
    %2055 = vst [vmem:[#allocation10 + $0x1e] sm:$0x1] %v2042
    %2056 = vst [vmem:[#allocation10 + $0x26] sm:$0x1] %v2025
    %2057 = vst [vmem:[#allocation10 + $0x2e] sm:$0x1] %v2039
    %2058 = vst [vmem:[#allocation10 + $0x36] sm:$0x1] %v2041
    %2059 = vst [vmem:[#allocation10 + $0x3e] sm:$0x1] %v2043
    %v2060 = vld [vmem:[#allocation4 + $0x7] sm:$0x1]
    %v2061 = vld [vmem:[#allocation4 + $0xf] sm:$0x1]
    %v2062 = vld [vmem:[#allocation4 + $0x17] sm:$0x1]
    %v2063 = vld [vmem:[#allocation4 + $0x1f] sm:$0x1]
    %v2064 = vld [vmem:[#allocation4 + $0x27] sm:$0x1]
    %v2065 = vld [vmem:[#allocation4 + $0x2f] sm:$0x1]
    %v2066 = vld [vmem:[#allocation4 + $0x37] sm:$0x1]
    %v2067 = vld [vmem:[#allocation4 + $0x3f] sm:$0x1]
    %v2076 = vrot.slane %v2061, 7
    %v2077 = vsel %vm229, %v2076, %v2060
    %v2078 = vrot.slane %v2062, 6
    %v2079 = vsel %vm232, %v2078, %v2077
    %v2080 = vrot.slane %v2063, 5
    %v2081 = vsel %vm235, %v2080, %v2079
    %v2082 = vrot.slane %v2064, 4
    %v2083 = vsel %vm238, %v2082, %v2081
    %v2084 = vrot.slane %v2065, 3
    %v2085 = vsel %vm241, %v2084, %v2083
    %v2086 = vrot.slane %v2066, 2
    %v2087 = vsel %vm244, %v2086, %v2085
    %v2088 = vrot.slane %v2067, 1
    %v2089 = vsel %vm247, %v2088, %v2087
    %2091 = vmatprep.subr.mxu0 %v121
    %2092 = vmatpush1.msra.mxu0 %v120
    %2093 = vmatprep.subr.mxu0 %v117
    %2094 = vmatpush1.msra.mxu0 %v116
    %2095 = vmatprep.subr.mxu0 %v113
    %2096 = vmatpush1.msra.mxu0 %v112
    %2097 = vmatprep.subr.mxu0 %v109
    %2098 = vmatpush1.msra.mxu0 %v108
    %2099 = vmatprep.subr.mxu0 %v105
    %2100 = vmatpush1.msra.mxu0 %v104
    %2101 = vmatprep.subr.mxu0 %v101
    %2102 = vmatpush1.msra.mxu0 %v100
    %2103 = vmatprep.subr.mxu0 %v97
    %2104 = vmatpush1.msra.mxu0 %v96
    %2105 = vmatprep.subr.mxu0 %v93
    %2106 = vmatpush1.msra.mxu0 %v92
    %2107 = vmatprep.subr.mxu0 %v89
    %2108 = vmatpush1.msra.mxu0 %v88
    %2109 = vmatprep.subr.mxu0 %v85
    %2110 = vmatpush1.msra.mxu0 %v84
    %2111 = vmatprep.subr.mxu0 %v81
    %2112 = vmatpush1.msra.mxu0 %v80
    %2113 = vmatprep.subr.mxu0 %v77
    %2114 = vmatpush1.msra.mxu0 %v76
    %2115 = vmatprep.subr.mxu0 %v73
    %2116 = vmatpush1.msra.mxu0 %v72
    %2117 = vmatprep.subr.mxu0 %v69
    %2118 = vmatpush1.msra.mxu0 %v68
    %2119 = vmatprep.subr.mxu0 %v65
    %2120 = vmatpush1.msra.mxu0 %v64
    %2121 = vmatprep.subr.mxu0 %v61
    %2122 = vmatpush1.msra.mxu0 %v60
    %2123 = vmatprep.subr.mxu0 %v185
    %2124 = vmatpush2.msra.mxu0 %v184
    %2125 = vmatprep.subr.mxu0 %v181
    %2126 = vmatpush2.msra.mxu0 %v180
    %2127 = vmatprep.subr.mxu0 %v177
    %2128 = vmatpush2.msra.mxu0 %v176
    %2129 = vmatprep.subr.mxu0 %v173
    %2130 = vmatpush2.msra.mxu0 %v172
    %2131 = vmatprep.subr.mxu0 %v169
    %2132 = vmatpush2.msra.mxu0 %v168
    %2133 = vmatprep.subr.mxu0 %v165
    %2134 = vmatpush2.msra.mxu0 %v164
    %2135 = vmatprep.subr.mxu0 %v161
    %2136 = vmatpush2.msra.mxu0 %v160
    %2137 = vmatprep.subr.mxu0 %v157
    %2138 = vmatpush2.msra.mxu0 %v156
    %2139 = vmatprep.subr.mxu0 %v153
    %2140 = vmatpush2.msra.mxu0 %v152
    %2141 = vmatprep.subr.mxu0 %v149
    %2142 = vmatpush2.msra.mxu0 %v148
    %2143 = vmatprep.subr.mxu0 %v145
    %2144 = vmatpush2.msra.mxu0 %v144
    %2145 = vmatprep.subr.mxu0 %v141
    %2146 = vmatpush2.msra.mxu0 %v140
    %2147 = vmatprep.subr.mxu0 %v137
    %2148 = vmatpush2.msra.mxu0 %v136
    %2149 = vmatprep.subr.mxu0 %v133
    %2150 = vmatpush2.msra.mxu0 %v132
    %2151 = vmatprep.subr.mxu0 %v129
    %2152 = vmatpush2.msra.mxu0 %v128
    %2153 = vmatprep.subr.mxu0 %v125
    %2154 = vmatpush2.msra.mxu0 %v124
    %2155 = vmatprep.mubr.f32.mxu0 %v1993
    %2156 = vmatmul.mubr.f32.gmra.mxu0 %v2089
    %v2157 = vpop.f32.mrf.mxu0
    %v2158 = vadd.f32 %v193, %v2157
    %v2159 = vpop.f32.mrf.mxu0
    %v2160 = vadd.f32 %v197, %v2159
    %2161 = vdwg.mxu0
    %2162 = vmatprep.subr.mxu0 %v123
    %2163 = vmatpush1.msra.mxu0 %v122
    %2164 = vmatprep.subr.mxu0 %v119
    %2165 = vmatpush1.msra.mxu0 %v118
    %2166 = vmatprep.subr.mxu0 %v115
    %2167 = vmatpush1.msra.mxu0 %v114
    %2168 = vmatprep.subr.mxu0 %v111
    %2169 = vmatpush1.msra.mxu0 %v110
    %2170 = vmatprep.subr.mxu0 %v107
    %2171 = vmatpush1.msra.mxu0 %v106
    %2172 = vmatprep.subr.mxu0 %v103
    %2173 = vmatpush1.msra.mxu0 %v102
    %2174 = vmatprep.subr.mxu0 %v99
    %2175 = vmatpush1.msra.mxu0 %v98
    %2176 = vmatprep.subr.mxu0 %v95
    %2177 = vmatpush1.msra.mxu0 %v94
    %2178 = vmatprep.subr.mxu0 %v91
    %2179 = vmatpush1.msra.mxu0 %v90
    %2180 = vmatprep.subr.mxu0 %v87
    %2181 = vmatpush1.msra.mxu0 %v86
    %2182 = vmatprep.subr.mxu0 %v83
    %2183 = vmatpush1.msra.mxu0 %v82
    %2184 = vmatprep.subr.mxu0 %v79
    %2185 = vmatpush1.msra.mxu0 %v78
    %2186 = vmatprep.subr.mxu0 %v75
    %2187 = vmatpush1.msra.mxu0 %v74
    %2188 = vmatprep.subr.mxu0 %v71
    %2189 = vmatpush1.msra.mxu0 %v70
    %2190 = vmatprep.subr.mxu0 %v67
    %2191 = vmatpush1.msra.mxu0 %v66
    %2192 = vmatprep.subr.mxu0 %v63
    %2193 = vmatpush1.msra.mxu0 %v62
    %2194 = vmatprep.subr.mxu0 %v187
    %2195 = vmatpush2.msra.mxu0 %v186
    %2196 = vmatprep.subr.mxu0 %v183
    %2197 = vmatpush2.msra.mxu0 %v182
    %2198 = vmatprep.subr.mxu0 %v179
    %2199 = vmatpush2.msra.mxu0 %v178
    %2200 = vmatprep.subr.mxu0 %v175
    %2201 = vmatpush2.msra.mxu0 %v174
    %2202 = vmatprep.subr.mxu0 %v171
    %2203 = vmatpush2.msra.mxu0 %v170
    %2204 = vmatprep.subr.mxu0 %v167
    %2205 = vmatpush2.msra.mxu0 %v166
    %2206 = vmatprep.subr.mxu0 %v163
    %2207 = vmatpush2.msra.mxu0 %v162
    %2208 = vmatprep.subr.mxu0 %v159
    %2209 = vmatpush2.msra.mxu0 %v158
    %2210 = vmatprep.subr.mxu0 %v155
    %2211 = vmatpush2.msra.mxu0 %v154
    %2212 = vmatprep.subr.mxu0 %v151
    %2213 = vmatpush2.msra.mxu0 %v150
    %2214 = vmatprep.subr.mxu0 %v147
    %2215 = vmatpush2.msra.mxu0 %v146
    %2216 = vmatprep.subr.mxu0 %v143
    %2217 = vmatpush2.msra.mxu0 %v142
    %2218 = vmatprep.subr.mxu0 %v139
    %2219 = vmatpush2.msra.mxu0 %v138
    %2220 = vmatprep.subr.mxu0 %v135
    %2221 = vmatpush2.msra.mxu0 %v134
    %2222 = vmatprep.subr.mxu0 %v131
    %2223 = vmatpush2.msra.mxu0 %v130
    %2224 = vmatprep.subr.mxu0 %v127
    %2225 = vmatpush2.msra.mxu0 %v126
    %2226 = vmatprep.mubr.f32.mxu0 %v1993
    %2227 = vmatmul.mubr.f32.gmra.mxu0 %v2089
    %v2228 = vpop.f32.mrf.mxu0
    %v2229 = vadd.f32 %v201, %v2228
    %v2230 = vpop.f32.mrf.mxu0
    %v2231 = vadd.f32 %v205, %v2230
    %2232 = vdwg.mxu0
    %v2233 = vxor.u32 %v2158, 2147483648
    %v2234 = vmul.f32 %v2233, 1.442695
    %v2235 = vpow.pop %v2234
    %v2236 = vadd.f32 %v2235, 1.0
    %v2237 = vrcp.pop %v2236
    %v2238 = vmul.f32 1.0, %v2237
    %v2239 = vxor.u32 %v2160, 2147483648
    %v2240 = vmul.f32 %v2239, 1.442695
    %v2241 = vpow.pop %v2240
    %v2242 = vadd.f32 %v2241, 1.0
    %v2243 = vrcp.pop %v2242
    %v2244 = vmul.f32 1.0, %v2243
    %v2245 = vtanh.pop %v2229
    %v2246 = vxor.u32 %v2231, 2147483648
    %v2247 = vmul.f32 %v2246, 1.442695
    %v2248 = vpow.pop %v2247
    %v2249 = vadd.f32 %v2248, 1.0
    %v2250 = vrcp.pop %v2249
    %v2251 = vmul.f32 1.0, %v2250
    %v2252 = vmul.f32 %v2244, %v1991
    %v2253 = vmul.f32 %v2238, %v2245
    %v2254 = vadd.f32 %v2252, %v2253
    %v2255 = vtanh.pop %v2254
    %v2256 = vmul.f32 %v2251, %v2255
    %v2258 = vcombine.high %v2256, %v2256
    %v2260 = vunpack.c.l.s4 1966171168
    %v2261 = vunpack.c.0.s8 %v2260
    %v2262 = vlaneseq
    %v2263 = vshrl.u32 %v2262, 7
    %v2264 = vsub.s32 %v2261, %v2263
    %v2265 = vrot.slane %v2256, %v2264
    %v2267 = vunpack.c.l.s4 1966171168
    %v2268 = vunpack.c.0.s8 %v2267
    %v2269 = vlaneseq
    %v2270 = vshrl.u32 %v2269, 7
    %v2271 = vsub.s32 %v2268, %v2270
    %v2272 = vrot.slane %v2258, %v2271
    %v2273 = vcombine.high %v2265, %v2265
    %v2274 = vcombine.high %v2272, %v2272
    %v2276 = vunpack.c.l.s4 1966171168
    %v2277 = vunpack.c.0.s8 %v2276
    %v2278 = vlaneseq
    %v2279 = vshrl.u32 %v2278, 7
    %v2280 = vsub.s32 %v2277, %v2279
    %v2281 = vrot.slane %v2265, %v2280
    %v2283 = vunpack.c.l.s4 1966171168
    %v2284 = vunpack.c.0.s8 %v2283
    %v2285 = vlaneseq
    %v2286 = vshrl.u32 %v2285, 7
    %v2287 = vsub.s32 %v2284, %v2286
    %v2288 = vrot.slane %v2272, %v2287
    %v2290 = vunpack.c.l.s4 1966171168
    %v2291 = vunpack.c.0.s8 %v2290
    %v2292 = vlaneseq
    %v2293 = vshrl.u32 %v2292, 7
    %v2294 = vsub.s32 %v2291, %v2293
    %v2295 = vrot.slane %v2273, %v2294
    %v2297 = vunpack.c.l.s4 1966171168
    %v2298 = vunpack.c.0.s8 %v2297
    %v2299 = vlaneseq
    %v2300 = vshrl.u32 %v2299, 7
    %v2301 = vsub.s32 %v2298, %v2300
    %v2302 = vrot.slane %v2274, %v2301
    %v2303 = vcombine.high %v2281, %v2281
    %v2304 = vcombine.high %v2288, %v2288
    %v2305 = vcombine.high %v2295, %v2295
    %v2306 = vcombine.high %v2302, %v2302
    %2315 = vst [vmem:[#allocation10 + $0x7] sm:$0x1] %v2281
    %2316 = vst [vmem:[#allocation10 + $0xf] sm:$0x1] %v2295
    %2317 = vst [vmem:[#allocation10 + $0x17] sm:$0x1] %v2303
    %2318 = vst [vmem:[#allocation10 + $0x1f] sm:$0x1] %v2305
    %2319 = vst [vmem:[#allocation10 + $0x27] sm:$0x1] %v2288
    %2320 = vst [vmem:[#allocation10 + $0x2f] sm:$0x1] %v2302
    %2321 = vst [vmem:[#allocation10 + $0x37] sm:$0x1] %v2304
    %2322 = vst [vmem:[#allocation10 + $0x3f] sm:$0x1] %v2306
    %2323 = vst [vmem:[#allocation2] sm:$0xff] %v2256
    %2324 = vst [vmem:[#allocation3] sm:$0xff] %v2254
    // Predicated region
    $region30: #{tpu_custom_call.1} parent=1 // pred_check
      _
    $region31: #{tpu_custom_call.1} parent=1 // pred_check_branch
      %2326 = sbr.rel (0) target = $region33
    $region32: #{tpu_custom_call.1} parent=1 // pred_region
      %s2328 = ssub.s32 1024, 1024
      %2329 = vsyncadd [#allocation6], %s2328
      %s2330 = sshll.u32 [#allocation10], 4
      %s2331 = int_to_ptr.vmem [resolvable:$true] %s2330
      %2336 = dma.vmem_to_hbm [thread:$0]  %s2331, 1024, %s3, [#allocation6], 128, 128, 8
    $region33: #{tpu_custom_call.1} parent=1 // pred_fallthru
      _
    // Predicated region
    $region34: #{tpu_custom_call.1} parent=1 // pred_check
      _
    $region35: #{tpu_custom_call.1} parent=1 // pred_check_branch
      %2338 = sbr.rel (0) target = $region37
    $region36: #{tpu_custom_call.1} parent=1 // pred_region
      %2339 = dma.done [#allocation6], 1024
    $region37: #{tpu_custom_call.1} parent=1 // pred_fallthru
      _
    %2340 = vsyncpa [#allocation5], 1
    %2341 = vsyncpa [#allocation8], 1
    %2342 = vsyncpa [#allocation6], 1

</llo_original>
